<compile_context>
chip_gen: v5e
topology: v5e:2x2
jax: 0.10.0
libtpu: 0.0.40
codegen_flags: <defaults>
</compile_context>

<pallas_src>
import jax
import jax.numpy as jnp
from jax.experimental import pallas as pl
from jax.experimental.pallas import tpu as pltpu


def _edge_conv_kernel(src_ref, dst_ref, emsg_ref, xw_ref, o_ref):
    k = pl.program_id(0)

    @pl.when(k == 0)
    def _():
        o_ref[...] = jnp.zeros_like(o_ref)

    te = src_ref.shape[0]
    n_pad = xw_ref.shape[0]
    cdt = xw_ref.dtype  # compute dtype fed to the MXU (bf16 by default)

    # Gather one-hot  G[e, n] = (src[e] == n); src arrives as a [te, 1] column so the
    # node axis sits on lanes (cheap lane-iota compare, exact 0/1 even in bf16).
    lane_node_ids = jax.lax.broadcasted_iota(jnp.int32, (te, n_pad), 1)
    gather = (lane_node_ids == src_ref[...]).astype(cdt)              # [te, n_pad]

    # Scatter one-hot  S[n, e] = (dst[e] == n); dropped / padded edges were rewritten
    # to dst == n_pad in the wrapper, so their columns are all-zero -> no mask stream.
    sub_node_ids = jax.lax.broadcasted_iota(jnp.int32, (n_pad, te), 0)
    scatter = (sub_node_ids == dst_ref[...]).astype(cdt)              # [n_pad, te]

    # Node part of each message: G @ (X @ Wx^T) -- X@Wx^T was precomputed once in the
    # wrapper, so a single full-depth MXU matmul remains per tile.
    msg = jnp.dot(gather, xw_ref[...], preferred_element_type=jnp.float32)
    # Edge part (edge_attr @ We^T) was hoisted to the wrapper; just add the tile.
    msg = msg + emsg_ref[...].astype(jnp.float32)                     # [te, dout_p] f32

    # Sum-aggregate onto destination nodes, accumulating directly into the resident
    # f32 output block (constant out index_map keeps it in VMEM across the grid).
    o_ref[...] += jnp.dot(scatter, msg.astype(cdt),
                          preferred_element_type=jnp.float32)


def general_sample_edge_conv(x, edge_index, edge_attr, weight, edge_mask, *,
                             te=1024, compute_dtype=jnp.bfloat16):
    """Forward of GeneralSampleEdgeConv (edge-sampled EdgeConv, sum aggregation).

    x          : [N, dim_in]                       node features
    edge_index : [2, E] int                        row 0 = src, row 1 = dst
    edge_attr  : [E, edge_dim]                     edge features (edge_dim = 11)
    weight     : [dim_out, dim_in + edge_dim]      PyTorch Linear weight (bias=False)
    edge_mask  : [E] bool                          sampled-edge mask (rand < 0.5)
    """
    n, din = x.shape
    e = edge_index.shape[1]
    edge_dim = edge_attr.shape[1]
    dout = weight.shape[0]
    assert weight.shape[1] == din + edge_dim
    assert te % 128 == 0

    out_dtype = x.dtype

    # Degenerate case: no edges -> sum aggregation is identically zero.
    if e == 0:
        return jnp.zeros((n, dout), out_dtype)

    # Lane-dense output columns, sublane-aligned node rows.
    dout_p = pl.cdiv(dout, 128) * 128
    n_p = max(pl.cdiv(n, 8) * 8, 8)

    # ------- One-time XLA precompute (reassociated out of the edge loop) -------
    w = weight.astype(jnp.float32)
    wx_t = w[:, :din].T                                     # [din, dout]
    we_t = w[:, din:].T                                     # [edge_dim, dout]

    # XW[n] = x[n] @ Wx^T, padded to [n_p, dout_p] and cast once to the MXU dtype.
    xw = jnp.dot(x.astype(jnp.float32), wx_t)               # [n, dout]
    xw = jnp.pad(xw, ((0, n_p - n), (0, dout_p - dout))).astype(compute_dtype)

    # Edge part of every message (the K=11 matmul, hoisted out of the kernel).
    e_p = pl.cdiv(e, te) * te
    pad_e = e_p - e
    emsg = jnp.dot(edge_attr.astype(jnp.float32), we_t)     # [e, dout]
    emsg = jnp.pad(emsg, ((0, pad_e), (0, dout_p - dout))).astype(compute_dtype)

    # Indices: src as a [e_p, 1] column (gather one-hot), dst as a [1, e_p] row
    # (scatter one-hot).  Dropped and padded edges get dst == n_p so they scatter
    # to nothing -- this replaces the explicit mask stream entirely.
    src = jnp.pad(edge_index[0].astype(jnp.int32), (0, pad_e)).reshape(e_p, 1)
    dst = jnp.where(edge_mask, edge_index[1].astype(jnp.int32), n_p)
    dst = jnp.pad(dst, (0, pad_e), constant_values=n_p).reshape(1, e_p)

    # ------- Explicit VMEM budget (v5e scoped default is only 16 MiB) -------
    csz = jnp.dtype(compute_dtype).itemsize
    vmem_bytes = (
        2 * te * dout_p * csz          # double-buffered edge-message tiles
        + 2 * (te + te) * 4            # double-buffered src / dst tiles
        + 2 * n_p * dout_p * csz       # resident XW (double-buffer worst case)
        + n_p * dout_p * 4             # resident f32 output / accumulator
        + 2 * te * n_p * csz           # gather + scatter one-hot temporaries
        + te * dout_p * 4              # f32 msg temporary
    )
    vmem_limit = min(max(32 << 20, 2 * int(vmem_bytes) + (4 << 20)), 96 << 20)

    out = pl.pallas_call(
        _edge_conv_kernel,
        out_shape=jax.ShapeDtypeStruct((n_p, dout_p), jnp.float32),
        grid_spec=pltpu.PrefetchScalarGridSpec(
            num_scalar_prefetch=0,
            grid=(e_p // te,),
            in_specs=[
                pl.BlockSpec((te, 1), lambda k: (k, 0)),            # src (column)
                pl.BlockSpec((1, te), lambda k: (0, k)),            # dst (row)
                pl.BlockSpec((te, dout_p), lambda k: (k, 0)),       # edge messages
                pl.BlockSpec((n_p, dout_p), lambda k: (0, 0)),      # XW (resident)
            ],
            out_specs=pl.BlockSpec((n_p, dout_p), lambda k: (0, 0)),
        ),
        compiler_params=pltpu.CompilerParams(
            dimension_semantics=("arbitrary",),
            vmem_limit_bytes=vmem_limit,
        ),
    )(src, dst, emsg, xw)

    return out[:n, :dout].astype(out_dtype)


if __name__ == "__main__":
    # Small graph consistent with the module: 128 nodes, 512 directed edges,
    # node dim 64, edge dim 11 (fixed by the module), output dim 64.
    N, E, DIM_IN, EDGE_DIM, DIM_OUT = 128, 512, 64, 11, 64

    key = jax.random.PRNGKey(0)
    kx, ke, ka, kw, km = jax.random.split(key, 5)

    x = jax.random.normal(kx, (N, DIM_IN), dtype=jnp.float32)
    edge_index = jax.random.randint(ke, (2, E), 0, N, dtype=jnp.int32)
    edge_attr = jax.random.normal(ka, (E, EDGE_DIM), dtype=jnp.float32)
    # PyTorch Linear(dim_in + edge_dim, dim_out, bias=False) weight layout.
    weight = jax.random.normal(kw, (DIM_OUT, DIM_IN + EDGE_DIM),
                               dtype=jnp.float32) / jnp.sqrt(DIM_IN + EDGE_DIM)
    # Random edge sampling (torch.rand(E) < 0.5), deterministic via PRNGKey.
    edge_mask = jax.random.uniform(km, (E,)) < 0.5

    # Pure-JAX reference: gather -> concat -> linear -> mask -> scatter-sum.
    src_r, dst_r = edge_index[0], edge_index[1]
    msg = jnp.concatenate([x[src_r], edge_attr], axis=-1) @ weight.T
    msg = msg * edge_mask[:, None].astype(msg.dtype)
    ref = jnp.zeros((N, DIM_OUT), jnp.float32).at[dst_r].add(msg)

    # Default path (bf16 MXU feed, f32 accumulation) -- looser tolerance.
    out_bf16 = general_sample_edge_conv(x, edge_index, edge_attr, weight, edge_mask)
    out_bf16 = jax.block_until_ready(out_bf16)
    assert out_bf16.shape == (N, DIM_OUT)
    assert float(jnp.max(jnp.abs(out_bf16 - ref))) < 2e-1, "bf16 path mismatch"

    # Exact f32 path -- tight tolerance against the reference.
    out_f32 = general_sample_edge_conv(x, edge_index, edge_attr, weight, edge_mask,
                                       compute_dtype=jnp.float32)
    out_f32 = jax.block_until_ready(out_f32)
    assert jnp.allclose(out_f32, ref, atol=1e-3, rtol=1e-3), "f32 path mismatch"

    print("KERNEL_OK")
</pallas_src>

<mosaic_0001>
module attributes {stable_mosaic.version = 11 : i64} {
  func.func @_edge_conv_kernel(%arg0: i32, %arg1: memref<1024x1xi32, #tpu.memory_space<vmem>>, %arg2: memref<1x1024xi32, #tpu.memory_space<vmem>>, %arg3: memref<1024x128xbf16, #tpu.memory_space<vmem>>, %arg4: memref<128x128xbf16, #tpu.memory_space<vmem>>, %arg5: memref<128x128xf32, #tpu.memory_space<vmem>>) attributes {dimension_semantics = [#tpu.dimension_semantics<arbitrary>], iteration_bounds = array<i64: 1>, scalar_prefetch = 0 : i64, scratch_operands = 0 : i64, tpu.core_type = #tpu.core_type<tc>, window_params = [{transform_indices = @transform_0, window_bounds = array<i64: 1024, 1>}, {transform_indices = @transform_1, window_bounds = array<i64: 1, 1024>}, {transform_indices = @transform_2, window_bounds = array<i64: 1024, 128>}, {pipeline_mode = #tpu.pipeline_mode<synchronous>, transform_indices = @transform_3, window_bounds = array<i64: 128, 128>}, {pipeline_mode = #tpu.pipeline_mode<synchronous>, transform_indices = @transform_4, window_bounds = array<i64: 128, 128>}]} {
    %c0_i32 = arith.constant 0 : i32
    %0 = arith.cmpi eq, %arg0, %c0_i32 : i32
    %1 = arith.extui %0 : i1 to i32
    %c0_i32_0 = arith.constant 0 : i32
    %2 = arith.cmpi ne, %1, %c0_i32_0 : i32
    scf.if %2 {
      %cst_13 = arith.constant 0.000000e+00 : f32
      %27 = vector.broadcast %cst_13 : f32 to vector<128x128xf32>
      %c0_14 = arith.constant 0 : index
      %c0_15 = arith.constant 0 : index
      %28 = vector.load %arg5[%c0_14, %c0_15] : memref<128x128xf32, #tpu.memory_space<vmem>>, vector<128x128xf32>
      tpu.vector_store %arg5[%c0_14, %c0_15], %27 {strides = array<i32>} : memref<128x128xf32, #tpu.memory_space<vmem>>, vector<128x128xf32>,
    } else {
    }
    %3 = tpu.iota {dimensions = array<i32: 1>} : vector<1024x128xi32>
    %c0 = arith.constant 0 : index
    %c0_1 = arith.constant 0 : index
    %4 = vector.load %arg1[%c0, %c0_1] : memref<1024x1xi32, #tpu.memory_space<vmem>>, vector<1024x1xi32>
    %5 = vector.broadcast %4 : vector<1024x1xi32> to vector<1024x128xi32>
    %6 = arith.cmpi eq, %3, %5 : vector<1024x128xi32>
    %7 = arith.extui %6 : vector<1024x128xi1> to vector<1024x128xi32>
    %8 = arith.sitofp %7 : vector<1024x128xi32> to vector<1024x128xf32>
    %9 = arith.truncf %8 : vector<1024x128xf32> to vector<1024x128xbf16>
    %10 = tpu.iota {dimensions = array<i32: 0>} : vector<128x1024xi32>
    %c0_2 = arith.constant 0 : index
    %c0_3 = arith.constant 0 : index
    %11 = vector.load %arg2[%c0_2, %c0_3] : memref<1x1024xi32, #tpu.memory_space<vmem>>, vector<1x1024xi32>
    %12 = vector.broadcast %11 : vector<1x1024xi32> to vector<128x1024xi32>
    %13 = arith.cmpi eq, %10, %12 : vector<128x1024xi32>
    %14 = arith.extui %13 : vector<128x1024xi1> to vector<128x1024xi32>
    %15 = arith.sitofp %14 : vector<128x1024xi32> to vector<128x1024xf32>
    %16 = arith.truncf %15 : vector<128x1024xf32> to vector<128x1024xbf16>
    %c0_4 = arith.constant 0 : index
    %c0_5 = arith.constant 0 : index
    %17 = vector.load %arg4[%c0_4, %c0_5] : memref<128x128xbf16, #tpu.memory_space<vmem>>, vector<128x128xbf16>
    %cst = arith.constant dense<0.000000e+00> : vector<1024x128xf32>
    %18 = tpu.matmul %9, %17, %cst {dimension_numbers = #tpu.dot_dimension_numbers<[1], [0], [0], [1], [0, 0, 1, 1], [], []>} : vector<1024x128xbf16>, vector<128x128xbf16>, vector<1024x128xf32> -> vector<1024x128xf32>
    %c0_6 = arith.constant 0 : index
    %c0_7 = arith.constant 0 : index
    %19 = vector.load %arg3[%c0_6, %c0_7] : memref<1024x128xbf16, #tpu.memory_space<vmem>>, vector<1024x128xbf16>
    %20 = arith.extf %19 : vector<1024x128xbf16> to vector<1024x128xf32>
    %21 = arith.addf %18, %20 : vector<1024x128xf32>
    %c0_8 = arith.constant 0 : index
    %c0_9 = arith.constant 0 : index
    %22 = vector.load %arg5[%c0_8, %c0_9] : memref<128x128xf32, #tpu.memory_space<vmem>>, vector<128x128xf32>
    %23 = arith.truncf %21 : vector<1024x128xf32> to vector<1024x128xbf16>
    %cst_10 = arith.constant dense<0.000000e+00> : vector<128x128xf32>
    %24 = tpu.matmul %16, %23, %cst_10 {dimension_numbers = #tpu.dot_dimension_numbers<[1], [0], [0], [1], [0, 0, 1, 1], [], []>} : vector<128x1024xbf16>, vector<1024x128xbf16>, vector<128x128xf32> -> vector<128x128xf32>
    %25 = arith.addf %22, %24 : vector<128x128xf32>
    %c0_11 = arith.constant 0 : index
    %c0_12 = arith.constant 0 : index
    %26 = vector.load %arg5[%c0_11, %c0_12] : memref<128x128xf32, #tpu.memory_space<vmem>>, vector<128x128xf32>
    tpu.vector_store %arg5[%c0_11, %c0_12], %25 {strides = array<i32>} : memref<128x128xf32, #tpu.memory_space<vmem>>, vector<128x128xf32>,
    return
  }
  func.func @transform_0(%arg0: i32) -> (i32, i32) {
    %c0_i32 = arith.constant 0 : i32
    %c0_i32_0 = arith.constant 0 : i32
    return %arg0, %c0_i32 : i32, i32
  }
  func.func @transform_1(%arg0: i32) -> (i32, i32) {
    %c0_i32 = arith.constant 0 : i32
    %c0_i32_0 = arith.constant 0 : i32
    return %c0_i32, %arg0 : i32, i32
  }
  func.func @transform_2(%arg0: i32) -> (i32, i32) {
    %c0_i32 = arith.constant 0 : i32
    %c0_i32_0 = arith.constant 0 : i32
    return %arg0, %c0_i32 : i32, i32
  }
  func.func @transform_3(%arg0: i32) -> (i32, i32) {
    %c0_i32 = arith.constant 0 : i32
    %c0_i32_0 = arith.constant 0 : i32
    %c0_i32_1 = arith.constant 0 : i32
    return %c0_i32, %c0_i32_0 : i32, i32
  }
  func.func @transform_4(%arg0: i32) -> (i32, i32) {
    %c0_i32 = arith.constant 0 : i32
    %c0_i32_0 = arith.constant 0 : i32
    %c0_i32_1 = arith.constant 0 : i32
    return %c0_i32, %c0_i32_0 : i32, i32
  }
}

</mosaic_0001>

<llo_original>
// kernel: tpu_custom_call.1
$region0: #{tpu_custom_call.1}
  #allocation0 [shape = 'u32[]', space=smem, size = 0x4, offset = 0x4, fixed_abs, tag = 'smem constant byte address 0x4 - core index']
  #allocation1 [shape = 'u32[72,128]{1,0:T(1,128)}', space=vmem, size = 0x9000, scoped, tag = 'internal scratch']
  %s0 = inlined_call_operand.vmem [shape: s32[1024,1], index: 0, kind: input, shape index: {}]
  %s1 = inlined_call_operand.vmem [shape: s32[1,1024], index: 1, kind: input, shape index: {}]
  %s2 = inlined_call_operand.vmem [shape: bf16[1024,128], index: 2, kind: input, shape index: {}]
  %s3 = inlined_call_operand.vmem [shape: bf16[128,128], index: 3, kind: input, shape index: {}]
  %s4 = inlined_call_operand.hbm [shape: f32[128,128], index: 4, kind: output, shape index: {}]
  %s5 = sld [smem:[#allocation0]]
  $region30: #{tpu_custom_call.1} parent=0
    _
  %s7 = ssub.s32 1, %s5
  %s8 = scalar_select 0, %s7, %s5
  $region1: #{tpu_custom_call.1} parent=0
    #allocation2 [shape = 'u8[65536]{0}', space=vmem, size = 0x10000, scoped, tag = 'output window, operand 0, single buffered']
    #allocation3 [shape = 's32[1]{0}', space=sflag, size = 0x4, scoped, tag = 'scoped memory for tpu_custom_call.1']
    %9 = vsyncpa [#allocation3], 0
    // Predicated region
    $region2: #{tpu_custom_call.1} parent=1 // pred_check
      _
    $region3: #{tpu_custom_call.1} parent=1 // pred_check_branch
      %11 = sbr.rel (0) target = $region5
    $region4: #{tpu_custom_call.1} parent=1 // pred_region
      _
    $region5: #{tpu_custom_call.1} parent=1 // pred_fallthru
      _
    // Predicated region
    $region6: #{tpu_custom_call.1} parent=1 // pred_check
      _
    $region7: #{tpu_custom_call.1} parent=1 // pred_check_branch
      %13 = sbr.rel (0) target = $region9
    $region8: #{tpu_custom_call.1} parent=1 // pred_region
      _
    $region9: #{tpu_custom_call.1} parent=1 // pred_fallthru
      _
    // Predicated region
    $region10: #{tpu_custom_call.1} parent=1 // pred_check
      _
    $region11: #{tpu_custom_call.1} parent=1 // pred_check_branch
      %15 = sbr.rel (0) target = $region13
    $region12: #{tpu_custom_call.1} parent=1 // pred_region
      _
    $region13: #{tpu_custom_call.1} parent=1 // pred_fallthru
      _
    // Predicated region
    $region14: #{tpu_custom_call.1} parent=1 // pred_check
      _
    $region15: #{tpu_custom_call.1} parent=1 // pred_check_branch
      %17 = sbr.rel (0) target = $region17
    $region16: #{tpu_custom_call.1} parent=1 // pred_region
      _
    $region17: #{tpu_custom_call.1} parent=1 // pred_fallthru
      _
    %p18 = scmp.eq.s32.totalorder 0, 0
    // Predicated region
    $region18: #{tpu_custom_call.1} parent=1 // pred_check
      %p19 = pneg %p18
    $region19: #{tpu_custom_call.1} parent=1 // pred_check_branch
      %21 = sbr.rel (%p19) target = $region21
    $region20: #{tpu_custom_call.1} parent=1 // pred_region
      %22 = vst [vmem:[#allocation2] sm:$0xff] 0.0
      %23 = vst [vmem:[#allocation2 + $0x8] sm:$0xff] 0.0
      %24 = vst [vmem:[#allocation2 + $0x10] sm:$0xff] 0.0
      %25 = vst [vmem:[#allocation2 + $0x18] sm:$0xff] 0.0
      %26 = vst [vmem:[#allocation2 + $0x20] sm:$0xff] 0.0
      %27 = vst [vmem:[#allocation2 + $0x28] sm:$0xff] 0.0
      %28 = vst [vmem:[#allocation2 + $0x30] sm:$0xff] 0.0
      %29 = vst [vmem:[#allocation2 + $0x38] sm:$0xff] 0.0
      %30 = vst [vmem:[#allocation2 + $0x40] sm:$0xff] 0.0
      %31 = vst [vmem:[#allocation2 + $0x48] sm:$0xff] 0.0
      %32 = vst [vmem:[#allocation2 + $0x50] sm:$0xff] 0.0
      %33 = vst [vmem:[#allocation2 + $0x58] sm:$0xff] 0.0
      %34 = vst [vmem:[#allocation2 + $0x60] sm:$0xff] 0.0
      %35 = vst [vmem:[#allocation2 + $0x68] sm:$0xff] 0.0
      %36 = vst [vmem:[#allocation2 + $0x70] sm:$0xff] 0.0
      %37 = vst [vmem:[#allocation2 + $0x78] sm:$0xff] 0.0
    $region21: #{tpu_custom_call.1} parent=1 // pred_fallthru
      _
    %v38 = vlaneseq
    %v39 = vand.u32 %v38, 127
    %v40 = vld [vmem:[%s0] sm:$0xff]
    %v41 = vld [vmem:[%s0 + $0x8] sm:$0xff]
    %v42 = vld [vmem:[%s0 + $0x10] sm:$0xff]
    %v43 = vld [vmem:[%s0 + $0x18] sm:$0xff]
    %v44 = vld [vmem:[%s0 + $0x20] sm:$0xff]
    %v45 = vld [vmem:[%s0 + $0x28] sm:$0xff]
    %v46 = vld [vmem:[%s0 + $0x30] sm:$0xff]
    %v47 = vld [vmem:[%s0 + $0x38] sm:$0xff]
    %v48 = vld [vmem:[%s0 + $0x40] sm:$0xff]
    %v49 = vld [vmem:[%s0 + $0x48] sm:$0xff]
    %v50 = vld [vmem:[%s0 + $0x50] sm:$0xff]
    %v51 = vld [vmem:[%s0 + $0x58] sm:$0xff]
    %v52 = vld [vmem:[%s0 + $0x60] sm:$0xff]
    %v53 = vld [vmem:[%s0 + $0x68] sm:$0xff]
    %v54 = vld [vmem:[%s0 + $0x70] sm:$0xff]
    %v55 = vld [vmem:[%s0 + $0x78] sm:$0xff]
    %v56 = vld [vmem:[%s0 + $0x80] sm:$0xff]
    %v57 = vld [vmem:[%s0 + $0x88] sm:$0xff]
    %v58 = vld [vmem:[%s0 + $0x90] sm:$0xff]
    %v59 = vld [vmem:[%s0 + $0x98] sm:$0xff]
    %v60 = vld [vmem:[%s0 + $0xa0] sm:$0xff]
    %v61 = vld [vmem:[%s0 + $0xa8] sm:$0xff]
    %v62 = vld [vmem:[%s0 + $0xb0] sm:$0xff]
    %v63 = vld [vmem:[%s0 + $0xb8] sm:$0xff]
    %v64 = vld [vmem:[%s0 + $0xc0] sm:$0xff]
    %v65 = vld [vmem:[%s0 + $0xc8] sm:$0xff]
    %v66 = vld [vmem:[%s0 + $0xd0] sm:$0xff]
    %v67 = vld [vmem:[%s0 + $0xd8] sm:$0xff]
    %v68 = vld [vmem:[%s0 + $0xe0] sm:$0xff]
    %v69 = vld [vmem:[%s0 + $0xe8] sm:$0xff]
    %v70 = vld [vmem:[%s0 + $0xf0] sm:$0xff]
    %v71 = vld [vmem:[%s0 + $0xf8] sm:$0xff]
    %v72 = vld [vmem:[%s0 + $0x100] sm:$0xff]
    %v73 = vld [vmem:[%s0 + $0x108] sm:$0xff]
    %v74 = vld [vmem:[%s0 + $0x110] sm:$0xff]
    %v75 = vld [vmem:[%s0 + $0x118] sm:$0xff]
    %v76 = vld [vmem:[%s0 + $0x120] sm:$0xff]
    %v77 = vld [vmem:[%s0 + $0x128] sm:$0xff]
    %v78 = vld [vmem:[%s0 + $0x130] sm:$0xff]
    %v79 = vld [vmem:[%s0 + $0x138] sm:$0xff]
    %v80 = vld [vmem:[%s0 + $0x140] sm:$0xff]
    %v81 = vld [vmem:[%s0 + $0x148] sm:$0xff]
    %v82 = vld [vmem:[%s0 + $0x150] sm:$0xff]
    %v83 = vld [vmem:[%s0 + $0x158] sm:$0xff]
    %v84 = vld [vmem:[%s0 + $0x160] sm:$0xff]
    %v85 = vld [vmem:[%s0 + $0x168] sm:$0xff]
    %v86 = vld [vmem:[%s0 + $0x170] sm:$0xff]
    %v87 = vld [vmem:[%s0 + $0x178] sm:$0xff]
    %v88 = vld [vmem:[%s0 + $0x180] sm:$0xff]
    %v89 = vld [vmem:[%s0 + $0x188] sm:$0xff]
    %v90 = vld [vmem:[%s0 + $0x190] sm:$0xff]
    %v91 = vld [vmem:[%s0 + $0x198] sm:$0xff]
    %v92 = vld [vmem:[%s0 + $0x1a0] sm:$0xff]
    %v93 = vld [vmem:[%s0 + $0x1a8] sm:$0xff]
    %v94 = vld [vmem:[%s0 + $0x1b0] sm:$0xff]
    %v95 = vld [vmem:[%s0 + $0x1b8] sm:$0xff]
    %v96 = vld [vmem:[%s0 + $0x1c0] sm:$0xff]
    %v97 = vld [vmem:[%s0 + $0x1c8] sm:$0xff]
    %v98 = vld [vmem:[%s0 + $0x1d0] sm:$0xff]
    %v99 = vld [vmem:[%s0 + $0x1d8] sm:$0xff]
    %v100 = vld [vmem:[%s0 + $0x1e0] sm:$0xff]
    %v101 = vld [vmem:[%s0 + $0x1e8] sm:$0xff]
    %v102 = vld [vmem:[%s0 + $0x1f0] sm:$0xff]
    %v103 = vld [vmem:[%s0 + $0x1f8] sm:$0xff]
    %v104 = vld [vmem:[%s0 + $0x200] sm:$0xff]
    %v105 = vld [vmem:[%s0 + $0x208] sm:$0xff]
    %v106 = vld [vmem:[%s0 + $0x210] sm:$0xff]
    %v107 = vld [vmem:[%s0 + $0x218] sm:$0xff]
    %v108 = vld [vmem:[%s0 + $0x220] sm:$0xff]
    %v109 = vld [vmem:[%s0 + $0x228] sm:$0xff]
    %v110 = vld [vmem:[%s0 + $0x230] sm:$0xff]
    %v111 = vld [vmem:[%s0 + $0x238] sm:$0xff]
    %v112 = vld [vmem:[%s0 + $0x240] sm:$0xff]
    %v113 = vld [vmem:[%s0 + $0x248] sm:$0xff]
    %v114 = vld [vmem:[%s0 + $0x250] sm:$0xff]
    %v115 = vld [vmem:[%s0 + $0x258] sm:$0xff]
    %v116 = vld [vmem:[%s0 + $0x260] sm:$0xff]
    %v117 = vld [vmem:[%s0 + $0x268] sm:$0xff]
    %v118 = vld [vmem:[%s0 + $0x270] sm:$0xff]
    %v119 = vld [vmem:[%s0 + $0x278] sm:$0xff]
    %v120 = vld [vmem:[%s0 + $0x280] sm:$0xff]
    %v121 = vld [vmem:[%s0 + $0x288] sm:$0xff]
    %v122 = vld [vmem:[%s0 + $0x290] sm:$0xff]
    %v123 = vld [vmem:[%s0 + $0x298] sm:$0xff]
    %v124 = vld [vmem:[%s0 + $0x2a0] sm:$0xff]
    %v125 = vld [vmem:[%s0 + $0x2a8] sm:$0xff]
    %v126 = vld [vmem:[%s0 + $0x2b0] sm:$0xff]
    %v127 = vld [vmem:[%s0 + $0x2b8] sm:$0xff]
    %v128 = vld [vmem:[%s0 + $0x2c0] sm:$0xff]
    %v129 = vld [vmem:[%s0 + $0x2c8] sm:$0xff]
    %v130 = vld [vmem:[%s0 + $0x2d0] sm:$0xff]
    %v131 = vld [vmem:[%s0 + $0x2d8] sm:$0xff]
    %v132 = vld [vmem:[%s0 + $0x2e0] sm:$0xff]
    %v133 = vld [vmem:[%s0 + $0x2e8] sm:$0xff]
    %v134 = vld [vmem:[%s0 + $0x2f0] sm:$0xff]
    %v135 = vld [vmem:[%s0 + $0x2f8] sm:$0xff]
    %v136 = vld [vmem:[%s0 + $0x300] sm:$0xff]
    %v137 = vld [vmem:[%s0 + $0x308] sm:$0xff]
    %v138 = vld [vmem:[%s0 + $0x310] sm:$0xff]
    %v139 = vld [vmem:[%s0 + $0x318] sm:$0xff]
    %v140 = vld [vmem:[%s0 + $0x320] sm:$0xff]
    %v141 = vld [vmem:[%s0 + $0x328] sm:$0xff]
    %v142 = vld [vmem:[%s0 + $0x330] sm:$0xff]
    %v143 = vld [vmem:[%s0 + $0x338] sm:$0xff]
    %v144 = vld [vmem:[%s0 + $0x340] sm:$0xff]
    %v145 = vld [vmem:[%s0 + $0x348] sm:$0xff]
    %v146 = vld [vmem:[%s0 + $0x350] sm:$0xff]
    %v147 = vld [vmem:[%s0 + $0x358] sm:$0xff]
    %v148 = vld [vmem:[%s0 + $0x360] sm:$0xff]
    %v149 = vld [vmem:[%s0 + $0x368] sm:$0xff]
    %v150 = vld [vmem:[%s0 + $0x370] sm:$0xff]
    %v151 = vld [vmem:[%s0 + $0x378] sm:$0xff]
    %v152 = vld [vmem:[%s0 + $0x380] sm:$0xff]
    %v153 = vld [vmem:[%s0 + $0x388] sm:$0xff]
    %v154 = vld [vmem:[%s0 + $0x390] sm:$0xff]
    %v155 = vld [vmem:[%s0 + $0x398] sm:$0xff]
    %v156 = vld [vmem:[%s0 + $0x3a0] sm:$0xff]
    %v157 = vld [vmem:[%s0 + $0x3a8] sm:$0xff]
    %v158 = vld [vmem:[%s0 + $0x3b0] sm:$0xff]
    %v159 = vld [vmem:[%s0 + $0x3b8] sm:$0xff]
    %v160 = vld [vmem:[%s0 + $0x3c0] sm:$0xff]
    %v161 = vld [vmem:[%s0 + $0x3c8] sm:$0xff]
    %v162 = vld [vmem:[%s0 + $0x3d0] sm:$0xff]
    %v163 = vld [vmem:[%s0 + $0x3d8] sm:$0xff]
    %v164 = vld [vmem:[%s0 + $0x3e0] sm:$0xff]
    %v165 = vld [vmem:[%s0 + $0x3e8] sm:$0xff]
    %v166 = vld [vmem:[%s0 + $0x3f0] sm:$0xff]
    %v167 = vld [vmem:[%s0 + $0x3f8] sm:$0xff]
    %168 = vset.pattern.permute.xlu0 0
    %169 = vperm.xlu0 %168, %v40
    %v170 = vpop.permute.xlu0 %169
    %171 = vset.pattern.permute.xlu0 0
    %172 = vperm.xlu0 %171, %v41
    %v173 = vpop.permute.xlu0 %172
    %174 = vset.pattern.permute.xlu0 0
    %175 = vperm.xlu0 %174, %v42
    %v176 = vpop.permute.xlu0 %175
    %177 = vset.pattern.permute.xlu0 0
    %178 = vperm.xlu0 %177, %v43
    %v179 = vpop.permute.xlu0 %178
    %180 = vset.pattern.permute.xlu0 0
    %181 = vperm.xlu0 %180, %v44
    %v182 = vpop.permute.xlu0 %181
    %183 = vset.pattern.permute.xlu0 0
    %184 = vperm.xlu0 %183, %v45
    %v185 = vpop.permute.xlu0 %184
    %186 = vset.pattern.permute.xlu0 0
    %187 = vperm.xlu0 %186, %v46
    %v188 = vpop.permute.xlu0 %187
    %189 = vset.pattern.permute.xlu0 0
    %190 = vperm.xlu0 %189, %v47
    %v191 = vpop.permute.xlu0 %190
    %192 = vset.pattern.permute.xlu0 0
    %193 = vperm.xlu0 %192, %v48
    %v194 = vpop.permute.xlu0 %193
    %195 = vset.pattern.permute.xlu0 0
    %196 = vperm.xlu0 %195, %v49
    %v197 = vpop.permute.xlu0 %196
    %198 = vset.pattern.permute.xlu0 0
    %199 = vperm.xlu0 %198, %v50
    %v200 = vpop.permute.xlu0 %199
    %201 = vset.pattern.permute.xlu0 0
    %202 = vperm.xlu0 %201, %v51
    %v203 = vpop.permute.xlu0 %202
    %204 = vset.pattern.permute.xlu0 0
    %205 = vperm.xlu0 %204, %v52
    %v206 = vpop.permute.xlu0 %205
    %207 = vset.pattern.permute.xlu0 0
    %208 = vperm.xlu0 %207, %v53
    %v209 = vpop.permute.xlu0 %208
    %210 = vset.pattern.permute.xlu0 0
    %211 = vperm.xlu0 %210, %v54
    %v212 = vpop.permute.xlu0 %211
    %213 = vset.pattern.permute.xlu0 0
    %214 = vperm.xlu0 %213, %v55
    %v215 = vpop.permute.xlu0 %214
    %216 = vset.pattern.permute.xlu0 0
    %217 = vperm.xlu0 %216, %v56
    %v218 = vpop.permute.xlu0 %217
    %219 = vset.pattern.permute.xlu0 0
    %220 = vperm.xlu0 %219, %v57
    %v221 = vpop.permute.xlu0 %220
    %222 = vset.pattern.permute.xlu0 0
    %223 = vperm.xlu0 %222, %v58
    %v224 = vpop.permute.xlu0 %223
    %225 = vset.pattern.permute.xlu0 0
    %226 = vperm.xlu0 %225, %v59
    %v227 = vpop.permute.xlu0 %226
    %228 = vset.pattern.permute.xlu0 0
    %229 = vperm.xlu0 %228, %v60
    %v230 = vpop.permute.xlu0 %229
    %231 = vset.pattern.permute.xlu0 0
    %232 = vperm.xlu0 %231, %v61
    %v233 = vpop.permute.xlu0 %232
    %234 = vset.pattern.permute.xlu0 0
    %235 = vperm.xlu0 %234, %v62
    %v236 = vpop.permute.xlu0 %235
    %237 = vset.pattern.permute.xlu0 0
    %238 = vperm.xlu0 %237, %v63
    %v239 = vpop.permute.xlu0 %238
    %240 = vset.pattern.permute.xlu0 0
    %241 = vperm.xlu0 %240, %v64
    %v242 = vpop.permute.xlu0 %241
    %243 = vset.pattern.permute.xlu0 0
    %244 = vperm.xlu0 %243, %v65
    %v245 = vpop.permute.xlu0 %244
    %246 = vset.pattern.permute.xlu0 0
    %247 = vperm.xlu0 %246, %v66
    %v248 = vpop.permute.xlu0 %247
    %249 = vset.pattern.permute.xlu0 0
    %250 = vperm.xlu0 %249, %v67
    %v251 = vpop.permute.xlu0 %250
    %252 = vset.pattern.permute.xlu0 0
    %253 = vperm.xlu0 %252, %v68
    %v254 = vpop.permute.xlu0 %253
    %255 = vset.pattern.permute.xlu0 0
    %256 = vperm.xlu0 %255, %v69
    %v257 = vpop.permute.xlu0 %256
    %258 = vset.pattern.permute.xlu0 0
    %259 = vperm.xlu0 %258, %v70
    %v260 = vpop.permute.xlu0 %259
    %261 = vset.pattern.permute.xlu0 0
    %262 = vperm.xlu0 %261, %v71
    %v263 = vpop.permute.xlu0 %262
    %264 = vset.pattern.permute.xlu0 0
    %265 = vperm.xlu0 %264, %v72
    %v266 = vpop.permute.xlu0 %265
    %267 = vset.pattern.permute.xlu0 0
    %268 = vperm.xlu0 %267, %v73
    %v269 = vpop.permute.xlu0 %268
    %270 = vset.pattern.permute.xlu0 0
    %271 = vperm.xlu0 %270, %v74
    %v272 = vpop.permute.xlu0 %271
    %273 = vset.pattern.permute.xlu0 0
    %274 = vperm.xlu0 %273, %v75
    %v275 = vpop.permute.xlu0 %274
    %276 = vset.pattern.permute.xlu0 0
    %277 = vperm.xlu0 %276, %v76
    %v278 = vpop.permute.xlu0 %277
    %279 = vset.pattern.permute.xlu0 0
    %280 = vperm.xlu0 %279, %v77
    %v281 = vpop.permute.xlu0 %280
    %282 = vset.pattern.permute.xlu0 0
    %283 = vperm.xlu0 %282, %v78
    %v284 = vpop.permute.xlu0 %283
    %285 = vset.pattern.permute.xlu0 0
    %286 = vperm.xlu0 %285, %v79
    %v287 = vpop.permute.xlu0 %286
    %288 = vset.pattern.permute.xlu0 0
    %289 = vperm.xlu0 %288, %v80
    %v290 = vpop.permute.xlu0 %289
    %291 = vset.pattern.permute.xlu0 0
    %292 = vperm.xlu0 %291, %v81
    %v293 = vpop.permute.xlu0 %292
    %294 = vset.pattern.permute.xlu0 0
    %295 = vperm.xlu0 %294, %v82
    %v296 = vpop.permute.xlu0 %295
    %297 = vset.pattern.permute.xlu0 0
    %298 = vperm.xlu0 %297, %v83
    %v299 = vpop.permute.xlu0 %298
    %300 = vset.pattern.permute.xlu0 0
    %301 = vperm.xlu0 %300, %v84
    %v302 = vpop.permute.xlu0 %301
    %303 = vset.pattern.permute.xlu0 0
    %304 = vperm.xlu0 %303, %v85
    %v305 = vpop.permute.xlu0 %304
    %306 = vset.pattern.permute.xlu0 0
    %307 = vperm.xlu0 %306, %v86
    %v308 = vpop.permute.xlu0 %307
    %309 = vset.pattern.permute.xlu0 0
    %310 = vperm.xlu0 %309, %v87
    %v311 = vpop.permute.xlu0 %310
    %312 = vset.pattern.permute.xlu0 0
    %313 = vperm.xlu0 %312, %v88
    %v314 = vpop.permute.xlu0 %313
    %315 = vset.pattern.permute.xlu0 0
    %316 = vperm.xlu0 %315, %v89
    %v317 = vpop.permute.xlu0 %316
    %318 = vset.pattern.permute.xlu0 0
    %319 = vperm.xlu0 %318, %v90
    %v320 = vpop.permute.xlu0 %319
    %321 = vset.pattern.permute.xlu0 0
    %322 = vperm.xlu0 %321, %v91
    %v323 = vpop.permute.xlu0 %322
    %324 = vset.pattern.permute.xlu0 0
    %325 = vperm.xlu0 %324, %v92
    %v326 = vpop.permute.xlu0 %325
    %327 = vset.pattern.permute.xlu0 0
    %328 = vperm.xlu0 %327, %v93
    %v329 = vpop.permute.xlu0 %328
    %330 = vset.pattern.permute.xlu0 0
    %331 = vperm.xlu0 %330, %v94
    %v332 = vpop.permute.xlu0 %331
    %333 = vset.pattern.permute.xlu0 0
    %334 = vperm.xlu0 %333, %v95
    %v335 = vpop.permute.xlu0 %334
    %336 = vset.pattern.permute.xlu0 0
    %337 = vperm.xlu0 %336, %v96
    %v338 = vpop.permute.xlu0 %337
    %339 = vset.pattern.permute.xlu0 0
    %340 = vperm.xlu0 %339, %v97
    %v341 = vpop.permute.xlu0 %340
    %342 = vset.pattern.permute.xlu0 0
    %343 = vperm.xlu0 %342, %v98
    %v344 = vpop.permute.xlu0 %343
    %345 = vset.pattern.permute.xlu0 0
    %346 = vperm.xlu0 %345, %v99
    %v347 = vpop.permute.xlu0 %346
    %348 = vset.pattern.permute.xlu0 0
    %349 = vperm.xlu0 %348, %v100
    %v350 = vpop.permute.xlu0 %349
    %351 = vset.pattern.permute.xlu0 0
    %352 = vperm.xlu0 %351, %v101
    %v353 = vpop.permute.xlu0 %352
    %354 = vset.pattern.permute.xlu0 0
    %355 = vperm.xlu0 %354, %v102
    %v356 = vpop.permute.xlu0 %355
    %357 = vset.pattern.permute.xlu0 0
    %358 = vperm.xlu0 %357, %v103
    %v359 = vpop.permute.xlu0 %358
    %360 = vset.pattern.permute.xlu0 0
    %361 = vperm.xlu0 %360, %v104
    %v362 = vpop.permute.xlu0 %361
    %363 = vset.pattern.permute.xlu0 0
    %364 = vperm.xlu0 %363, %v105
    %v365 = vpop.permute.xlu0 %364
    %366 = vset.pattern.permute.xlu0 0
    %367 = vperm.xlu0 %366, %v106
    %v368 = vpop.permute.xlu0 %367
    %369 = vset.pattern.permute.xlu0 0
    %370 = vperm.xlu0 %369, %v107
    %v371 = vpop.permute.xlu0 %370
    %372 = vset.pattern.permute.xlu0 0
    %373 = vperm.xlu0 %372, %v108
    %v374 = vpop.permute.xlu0 %373
    %375 = vset.pattern.permute.xlu0 0
    %376 = vperm.xlu0 %375, %v109
    %v377 = vpop.permute.xlu0 %376
    %378 = vset.pattern.permute.xlu0 0
    %379 = vperm.xlu0 %378, %v110
    %v380 = vpop.permute.xlu0 %379
    %381 = vset.pattern.permute.xlu0 0
    %382 = vperm.xlu0 %381, %v111
    %v383 = vpop.permute.xlu0 %382
    %384 = vset.pattern.permute.xlu0 0
    %385 = vperm.xlu0 %384, %v112
    %v386 = vpop.permute.xlu0 %385
    %387 = vset.pattern.permute.xlu0 0
    %388 = vperm.xlu0 %387, %v113
    %v389 = vpop.permute.xlu0 %388
    %390 = vset.pattern.permute.xlu0 0
    %391 = vperm.xlu0 %390, %v114
    %v392 = vpop.permute.xlu0 %391
    %393 = vset.pattern.permute.xlu0 0
    %394 = vperm.xlu0 %393, %v115
    %v395 = vpop.permute.xlu0 %394
    %396 = vset.pattern.permute.xlu0 0
    %397 = vperm.xlu0 %396, %v116
    %v398 = vpop.permute.xlu0 %397
    %399 = vset.pattern.permute.xlu0 0
    %400 = vperm.xlu0 %399, %v117
    %v401 = vpop.permute.xlu0 %400
    %402 = vset.pattern.permute.xlu0 0
    %403 = vperm.xlu0 %402, %v118
    %v404 = vpop.permute.xlu0 %403
    %405 = vset.pattern.permute.xlu0 0
    %406 = vperm.xlu0 %405, %v119
    %v407 = vpop.permute.xlu0 %406
    %408 = vset.pattern.permute.xlu0 0
    %409 = vperm.xlu0 %408, %v120
    %v410 = vpop.permute.xlu0 %409
    %411 = vset.pattern.permute.xlu0 0
    %412 = vperm.xlu0 %411, %v121
    %v413 = vpop.permute.xlu0 %412
    %414 = vset.pattern.permute.xlu0 0
    %415 = vperm.xlu0 %414, %v122
    %v416 = vpop.permute.xlu0 %415
    %417 = vset.pattern.permute.xlu0 0
    %418 = vperm.xlu0 %417, %v123
    %v419 = vpop.permute.xlu0 %418
    %420 = vset.pattern.permute.xlu0 0
    %421 = vperm.xlu0 %420, %v124
    %v422 = vpop.permute.xlu0 %421
    %423 = vset.pattern.permute.xlu0 0
    %424 = vperm.xlu0 %423, %v125
    %v425 = vpop.permute.xlu0 %424
    %426 = vset.pattern.permute.xlu0 0
    %427 = vperm.xlu0 %426, %v126
    %v428 = vpop.permute.xlu0 %427
    %429 = vset.pattern.permute.xlu0 0
    %430 = vperm.xlu0 %429, %v127
    %v431 = vpop.permute.xlu0 %430
    %432 = vset.pattern.permute.xlu0 0
    %433 = vperm.xlu0 %432, %v128
    %v434 = vpop.permute.xlu0 %433
    %435 = vset.pattern.permute.xlu0 0
    %436 = vperm.xlu0 %435, %v129
    %v437 = vpop.permute.xlu0 %436
    %438 = vset.pattern.permute.xlu0 0
    %439 = vperm.xlu0 %438, %v130
    %v440 = vpop.permute.xlu0 %439
    %441 = vset.pattern.permute.xlu0 0
    %442 = vperm.xlu0 %441, %v131
    %v443 = vpop.permute.xlu0 %442
    %444 = vset.pattern.permute.xlu0 0
    %445 = vperm.xlu0 %444, %v132
    %v446 = vpop.permute.xlu0 %445
    %447 = vset.pattern.permute.xlu0 0
    %448 = vperm.xlu0 %447, %v133
    %v449 = vpop.permute.xlu0 %448
    %450 = vset.pattern.permute.xlu0 0
    %451 = vperm.xlu0 %450, %v134
    %v452 = vpop.permute.xlu0 %451
    %453 = vset.pattern.permute.xlu0 0
    %454 = vperm.xlu0 %453, %v135
    %v455 = vpop.permute.xlu0 %454
    %456 = vset.pattern.permute.xlu0 0
    %457 = vperm.xlu0 %456, %v136
    %v458 = vpop.permute.xlu0 %457
    %459 = vset.pattern.permute.xlu0 0
    %460 = vperm.xlu0 %459, %v137
    %v461 = vpop.permute.xlu0 %460
    %462 = vset.pattern.permute.xlu0 0
    %463 = vperm.xlu0 %462, %v138
    %v464 = vpop.permute.xlu0 %463
    %465 = vset.pattern.permute.xlu0 0
    %466 = vperm.xlu0 %465, %v139
    %v467 = vpop.permute.xlu0 %466
    %468 = vset.pattern.permute.xlu0 0
    %469 = vperm.xlu0 %468, %v140
    %v470 = vpop.permute.xlu0 %469
    %471 = vset.pattern.permute.xlu0 0
    %472 = vperm.xlu0 %471, %v141
    %v473 = vpop.permute.xlu0 %472
    %474 = vset.pattern.permute.xlu0 0
    %475 = vperm.xlu0 %474, %v142
    %v476 = vpop.permute.xlu0 %475
    %477 = vset.pattern.permute.xlu0 0
    %478 = vperm.xlu0 %477, %v143
    %v479 = vpop.permute.xlu0 %478
    %480 = vset.pattern.permute.xlu0 0
    %481 = vperm.xlu0 %480, %v144
    %v482 = vpop.permute.xlu0 %481
    %483 = vset.pattern.permute.xlu0 0
    %484 = vperm.xlu0 %483, %v145
    %v485 = vpop.permute.xlu0 %484
    %486 = vset.pattern.permute.xlu0 0
    %487 = vperm.xlu0 %486, %v146
    %v488 = vpop.permute.xlu0 %487
    %489 = vset.pattern.permute.xlu0 0
    %490 = vperm.xlu0 %489, %v147
    %v491 = vpop.permute.xlu0 %490
    %492 = vset.pattern.permute.xlu0 0
    %493 = vperm.xlu0 %492, %v148
    %v494 = vpop.permute.xlu0 %493
    %495 = vset.pattern.permute.xlu0 0
    %496 = vperm.xlu0 %495, %v149
    %v497 = vpop.permute.xlu0 %496
    %498 = vset.pattern.permute.xlu0 0
    %499 = vperm.xlu0 %498, %v150
    %v500 = vpop.permute.xlu0 %499
    %501 = vset.pattern.permute.xlu0 0
    %502 = vperm.xlu0 %501, %v151
    %v503 = vpop.permute.xlu0 %502
    %504 = vset.pattern.permute.xlu0 0
    %505 = vperm.xlu0 %504, %v152
    %v506 = vpop.permute.xlu0 %505
    %507 = vset.pattern.permute.xlu0 0
    %508 = vperm.xlu0 %507, %v153
    %v509 = vpop.permute.xlu0 %508
    %510 = vset.pattern.permute.xlu0 0
    %511 = vperm.xlu0 %510, %v154
    %v512 = vpop.permute.xlu0 %511
    %513 = vset.pattern.permute.xlu0 0
    %514 = vperm.xlu0 %513, %v155
    %v515 = vpop.permute.xlu0 %514
    %516 = vset.pattern.permute.xlu0 0
    %517 = vperm.xlu0 %516, %v156
    %v518 = vpop.permute.xlu0 %517
    %519 = vset.pattern.permute.xlu0 0
    %520 = vperm.xlu0 %519, %v157
    %v521 = vpop.permute.xlu0 %520
    %522 = vset.pattern.permute.xlu0 0
    %523 = vperm.xlu0 %522, %v158
    %v524 = vpop.permute.xlu0 %523
    %525 = vset.pattern.permute.xlu0 0
    %526 = vperm.xlu0 %525, %v159
    %v527 = vpop.permute.xlu0 %526
    %528 = vset.pattern.permute.xlu0 0
    %529 = vperm.xlu0 %528, %v160
    %v530 = vpop.permute.xlu0 %529
    %531 = vset.pattern.permute.xlu0 0
    %532 = vperm.xlu0 %531, %v161
    %v533 = vpop.permute.xlu0 %532
    %534 = vset.pattern.permute.xlu0 0
    %535 = vperm.xlu0 %534, %v162
    %v536 = vpop.permute.xlu0 %535
    %537 = vset.pattern.permute.xlu0 0
    %538 = vperm.xlu0 %537, %v163
    %v539 = vpop.permute.xlu0 %538
    %540 = vset.pattern.permute.xlu0 0
    %541 = vperm.xlu0 %540, %v164
    %v542 = vpop.permute.xlu0 %541
    %543 = vset.pattern.permute.xlu0 0
    %544 = vperm.xlu0 %543, %v165
    %v545 = vpop.permute.xlu0 %544
    %546 = vset.pattern.permute.xlu0 0
    %547 = vperm.xlu0 %546, %v166
    %v548 = vpop.permute.xlu0 %547
    %549 = vset.pattern.permute.xlu0 0
    %550 = vperm.xlu0 %549, %v167
    %v551 = vpop.permute.xlu0 %550
    %vm552 = vcmp.eq.s32.totalorder %v39, %v170
    %vm553 = vcmp.eq.s32.totalorder %v39, %v173
    %vm554 = vcmp.eq.s32.totalorder %v39, %v176
    %vm555 = vcmp.eq.s32.totalorder %v39, %v179
    %vm556 = vcmp.eq.s32.totalorder %v39, %v182
    %vm557 = vcmp.eq.s32.totalorder %v39, %v185
    %vm558 = vcmp.eq.s32.totalorder %v39, %v188
    %vm559 = vcmp.eq.s32.totalorder %v39, %v191
    %vm560 = vcmp.eq.s32.totalorder %v39, %v194
    %vm561 = vcmp.eq.s32.totalorder %v39, %v197
    %vm562 = vcmp.eq.s32.totalorder %v39, %v200
    %vm563 = vcmp.eq.s32.totalorder %v39, %v203
    %vm564 = vcmp.eq.s32.totalorder %v39, %v206
    %vm565 = vcmp.eq.s32.totalorder %v39, %v209
    %vm566 = vcmp.eq.s32.totalorder %v39, %v212
    %vm567 = vcmp.eq.s32.totalorder %v39, %v215
    %vm568 = vcmp.eq.s32.totalorder %v39, %v218
    %vm569 = vcmp.eq.s32.totalorder %v39, %v221
    %vm570 = vcmp.eq.s32.totalorder %v39, %v224
    %vm571 = vcmp.eq.s32.totalorder %v39, %v227
    %vm572 = vcmp.eq.s32.totalorder %v39, %v230
    %vm573 = vcmp.eq.s32.totalorder %v39, %v233
    %vm574 = vcmp.eq.s32.totalorder %v39, %v236
    %vm575 = vcmp.eq.s32.totalorder %v39, %v239
    %vm576 = vcmp.eq.s32.totalorder %v39, %v242
    %vm577 = vcmp.eq.s32.totalorder %v39, %v245
    %vm578 = vcmp.eq.s32.totalorder %v39, %v248
    %vm579 = vcmp.eq.s32.totalorder %v39, %v251
    %vm580 = vcmp.eq.s32.totalorder %v39, %v254
    %vm581 = vcmp.eq.s32.totalorder %v39, %v257
    %vm582 = vcmp.eq.s32.totalorder %v39, %v260
    %vm583 = vcmp.eq.s32.totalorder %v39, %v263
    %vm584 = vcmp.eq.s32.totalorder %v39, %v266
    %vm585 = vcmp.eq.s32.totalorder %v39, %v269
    %vm586 = vcmp.eq.s32.totalorder %v39, %v272
    %vm587 = vcmp.eq.s32.totalorder %v39, %v275
    %vm588 = vcmp.eq.s32.totalorder %v39, %v278
    %vm589 = vcmp.eq.s32.totalorder %v39, %v281
    %vm590 = vcmp.eq.s32.totalorder %v39, %v284
    %vm591 = vcmp.eq.s32.totalorder %v39, %v287
    %vm592 = vcmp.eq.s32.totalorder %v39, %v290
    %vm593 = vcmp.eq.s32.totalorder %v39, %v293
    %vm594 = vcmp.eq.s32.totalorder %v39, %v296
    %vm595 = vcmp.eq.s32.totalorder %v39, %v299
    %vm596 = vcmp.eq.s32.totalorder %v39, %v302
    %vm597 = vcmp.eq.s32.totalorder %v39, %v305
    %vm598 = vcmp.eq.s32.totalorder %v39, %v308
    %vm599 = vcmp.eq.s32.totalorder %v39, %v311
    %vm600 = vcmp.eq.s32.totalorder %v39, %v314
    %vm601 = vcmp.eq.s32.totalorder %v39, %v317
    %vm602 = vcmp.eq.s32.totalorder %v39, %v320
    %vm603 = vcmp.eq.s32.totalorder %v39, %v323
    %vm604 = vcmp.eq.s32.totalorder %v39, %v326
    %vm605 = vcmp.eq.s32.totalorder %v39, %v329
    %vm606 = vcmp.eq.s32.totalorder %v39, %v332
    %vm607 = vcmp.eq.s32.totalorder %v39, %v335
    %vm608 = vcmp.eq.s32.totalorder %v39, %v338
    %vm609 = vcmp.eq.s32.totalorder %v39, %v341
    %vm610 = vcmp.eq.s32.totalorder %v39, %v344
    %vm611 = vcmp.eq.s32.totalorder %v39, %v347
    %vm612 = vcmp.eq.s32.totalorder %v39, %v350
    %vm613 = vcmp.eq.s32.totalorder %v39, %v353
    %vm614 = vcmp.eq.s32.totalorder %v39, %v356
    %vm615 = vcmp.eq.s32.totalorder %v39, %v359
    %vm616 = vcmp.eq.s32.totalorder %v39, %v362
    %vm617 = vcmp.eq.s32.totalorder %v39, %v365
    %vm618 = vcmp.eq.s32.totalorder %v39, %v368
    %vm619 = vcmp.eq.s32.totalorder %v39, %v371
    %vm620 = vcmp.eq.s32.totalorder %v39, %v374
    %vm621 = vcmp.eq.s32.totalorder %v39, %v377
    %vm622 = vcmp.eq.s32.totalorder %v39, %v380
    %vm623 = vcmp.eq.s32.totalorder %v39, %v383
    %vm624 = vcmp.eq.s32.totalorder %v39, %v386
    %vm625 = vcmp.eq.s32.totalorder %v39, %v389
    %vm626 = vcmp.eq.s32.totalorder %v39, %v392
    %vm627 = vcmp.eq.s32.totalorder %v39, %v395
    %vm628 = vcmp.eq.s32.totalorder %v39, %v398
    %vm629 = vcmp.eq.s32.totalorder %v39, %v401
    %vm630 = vcmp.eq.s32.totalorder %v39, %v404
    %vm631 = vcmp.eq.s32.totalorder %v39, %v407
    %vm632 = vcmp.eq.s32.totalorder %v39, %v410
    %vm633 = vcmp.eq.s32.totalorder %v39, %v413
    %vm634 = vcmp.eq.s32.totalorder %v39, %v416
    %vm635 = vcmp.eq.s32.totalorder %v39, %v419
    %vm636 = vcmp.eq.s32.totalorder %v39, %v422
    %vm637 = vcmp.eq.s32.totalorder %v39, %v425
    %vm638 = vcmp.eq.s32.totalorder %v39, %v428
    %vm639 = vcmp.eq.s32.totalorder %v39, %v431
    %vm640 = vcmp.eq.s32.totalorder %v39, %v434
    %vm641 = vcmp.eq.s32.totalorder %v39, %v437
    %vm642 = vcmp.eq.s32.totalorder %v39, %v440
    %vm643 = vcmp.eq.s32.totalorder %v39, %v443
    %vm644 = vcmp.eq.s32.totalorder %v39, %v446
    %vm645 = vcmp.eq.s32.totalorder %v39, %v449
    %vm646 = vcmp.eq.s32.totalorder %v39, %v452
    %vm647 = vcmp.eq.s32.totalorder %v39, %v455
    %vm648 = vcmp.eq.s32.totalorder %v39, %v458
    %vm649 = vcmp.eq.s32.totalorder %v39, %v461
    %vm650 = vcmp.eq.s32.totalorder %v39, %v464
    %vm651 = vcmp.eq.s32.totalorder %v39, %v467
    %vm652 = vcmp.eq.s32.totalorder %v39, %v470
    %vm653 = vcmp.eq.s32.totalorder %v39, %v473
    %vm654 = vcmp.eq.s32.totalorder %v39, %v476
    %vm655 = vcmp.eq.s32.totalorder %v39, %v479
    %vm656 = vcmp.eq.s32.totalorder %v39, %v482
    %vm657 = vcmp.eq.s32.totalorder %v39, %v485
    %vm658 = vcmp.eq.s32.totalorder %v39, %v488
    %vm659 = vcmp.eq.s32.totalorder %v39, %v491
    %vm660 = vcmp.eq.s32.totalorder %v39, %v494
    %vm661 = vcmp.eq.s32.totalorder %v39, %v497
    %vm662 = vcmp.eq.s32.totalorder %v39, %v500
    %vm663 = vcmp.eq.s32.totalorder %v39, %v503
    %vm664 = vcmp.eq.s32.totalorder %v39, %v506
    %vm665 = vcmp.eq.s32.totalorder %v39, %v509
    %vm666 = vcmp.eq.s32.totalorder %v39, %v512
    %vm667 = vcmp.eq.s32.totalorder %v39, %v515
    %vm668 = vcmp.eq.s32.totalorder %v39, %v518
    %vm669 = vcmp.eq.s32.totalorder %v39, %v521
    %vm670 = vcmp.eq.s32.totalorder %v39, %v524
    %vm671 = vcmp.eq.s32.totalorder %v39, %v527
    %vm672 = vcmp.eq.s32.totalorder %v39, %v530
    %vm673 = vcmp.eq.s32.totalorder %v39, %v533
    %vm674 = vcmp.eq.s32.totalorder %v39, %v536
    %vm675 = vcmp.eq.s32.totalorder %v39, %v539
    %vm676 = vcmp.eq.s32.totalorder %v39, %v542
    %vm677 = vcmp.eq.s32.totalorder %v39, %v545
    %vm678 = vcmp.eq.s32.totalorder %v39, %v548
    %vm679 = vcmp.eq.s32.totalorder %v39, %v551
    %v680 = vsel %vm552, 1, 0
    %v681 = vsel %vm553, 1, 0
    %v682 = vsel %vm554, 1, 0
    %v683 = vsel %vm555, 1, 0
    %v684 = vsel %vm556, 1, 0
    %v685 = vsel %vm557, 1, 0
    %v686 = vsel %vm558, 1, 0
    %v687 = vsel %vm559, 1, 0
    %v688 = vsel %vm560, 1, 0
    %v689 = vsel %vm561, 1, 0
    %v690 = vsel %vm562, 1, 0
    %v691 = vsel %vm563, 1, 0
    %v692 = vsel %vm564, 1, 0
    %v693 = vsel %vm565, 1, 0
    %v694 = vsel %vm566, 1, 0
    %v695 = vsel %vm567, 1, 0
    %v696 = vsel %vm568, 1, 0
    %v697 = vsel %vm569, 1, 0
    %v698 = vsel %vm570, 1, 0
    %v699 = vsel %vm571, 1, 0
    %v700 = vsel %vm572, 1, 0
    %v701 = vsel %vm573, 1, 0
    %v702 = vsel %vm574, 1, 0
    %v703 = vsel %vm575, 1, 0
    %v704 = vsel %vm576, 1, 0
    %v705 = vsel %vm577, 1, 0
    %v706 = vsel %vm578, 1, 0
    %v707 = vsel %vm579, 1, 0
    %v708 = vsel %vm580, 1, 0
    %v709 = vsel %vm581, 1, 0
    %v710 = vsel %vm582, 1, 0
    %v711 = vsel %vm583, 1, 0
    %v712 = vsel %vm584, 1, 0
    %v713 = vsel %vm585, 1, 0
    %v714 = vsel %vm586, 1, 0
    %v715 = vsel %vm587, 1, 0
    %v716 = vsel %vm588, 1, 0
    %v717 = vsel %vm589, 1, 0
    %v718 = vsel %vm590, 1, 0
    %v719 = vsel %vm591, 1, 0
    %v720 = vsel %vm592, 1, 0
    %v721 = vsel %vm593, 1, 0
    %v722 = vsel %vm594, 1, 0
    %v723 = vsel %vm595, 1, 0
    %v724 = vsel %vm596, 1, 0
    %v725 = vsel %vm597, 1, 0
    %v726 = vsel %vm598, 1, 0
    %v727 = vsel %vm599, 1, 0
    %v728 = vsel %vm600, 1, 0
    %v729 = vsel %vm601, 1, 0
    %v730 = vsel %vm602, 1, 0
    %v731 = vsel %vm603, 1, 0
    %v732 = vsel %vm604, 1, 0
    %v733 = vsel %vm605, 1, 0
    %v734 = vsel %vm606, 1, 0
    %v735 = vsel %vm607, 1, 0
    %v736 = vsel %vm608, 1, 0
    %v737 = vsel %vm609, 1, 0
    %v738 = vsel %vm610, 1, 0
    %v739 = vsel %vm611, 1, 0
    %v740 = vsel %vm612, 1, 0
    %v741 = vsel %vm613, 1, 0
    %v742 = vsel %vm614, 1, 0
    %v743 = vsel %vm615, 1, 0
    %v744 = vsel %vm616, 1, 0
    %v745 = vsel %vm617, 1, 0
    %v746 = vsel %vm618, 1, 0
    %v747 = vsel %vm619, 1, 0
    %v748 = vsel %vm620, 1, 0
    %v749 = vsel %vm621, 1, 0
    %v750 = vsel %vm622, 1, 0
    %v751 = vsel %vm623, 1, 0
    %v752 = vsel %vm624, 1, 0
    %v753 = vsel %vm625, 1, 0
    %v754 = vsel %vm626, 1, 0
    %v755 = vsel %vm627, 1, 0
    %v756 = vsel %vm628, 1, 0
    %v757 = vsel %vm629, 1, 0
    %v758 = vsel %vm630, 1, 0
    %v759 = vsel %vm631, 1, 0
    %v760 = vsel %vm632, 1, 0
    %v761 = vsel %vm633, 1, 0
    %v762 = vsel %vm634, 1, 0
    %v763 = vsel %vm635, 1, 0
    %v764 = vsel %vm636, 1, 0
    %v765 = vsel %vm637, 1, 0
    %v766 = vsel %vm638, 1, 0
    %v767 = vsel %vm639, 1, 0
    %v768 = vsel %vm640, 1, 0
    %v769 = vsel %vm641, 1, 0
    %v770 = vsel %vm642, 1, 0
    %v771 = vsel %vm643, 1, 0
    %v772 = vsel %vm644, 1, 0
    %v773 = vsel %vm645, 1, 0
    %v774 = vsel %vm646, 1, 0
    %v775 = vsel %vm647, 1, 0
    %v776 = vsel %vm648, 1, 0
    %v777 = vsel %vm649, 1, 0
    %v778 = vsel %vm650, 1, 0
    %v779 = vsel %vm651, 1, 0
    %v780 = vsel %vm652, 1, 0
    %v781 = vsel %vm653, 1, 0
    %v782 = vsel %vm654, 1, 0
    %v783 = vsel %vm655, 1, 0
    %v784 = vsel %vm656, 1, 0
    %v785 = vsel %vm657, 1, 0
    %v786 = vsel %vm658, 1, 0
    %v787 = vsel %vm659, 1, 0
    %v788 = vsel %vm660, 1, 0
    %v789 = vsel %vm661, 1, 0
    %v790 = vsel %vm662, 1, 0
    %v791 = vsel %vm663, 1, 0
    %v792 = vsel %vm664, 1, 0
    %v793 = vsel %vm665, 1, 0
    %v794 = vsel %vm666, 1, 0
    %v795 = vsel %vm667, 1, 0
    %v796 = vsel %vm668, 1, 0
    %v797 = vsel %vm669, 1, 0
    %v798 = vsel %vm670, 1, 0
    %v799 = vsel %vm671, 1, 0
    %v800 = vsel %vm672, 1, 0
    %v801 = vsel %vm673, 1, 0
    %v802 = vsel %vm674, 1, 0
    %v803 = vsel %vm675, 1, 0
    %v804 = vsel %vm676, 1, 0
    %v805 = vsel %vm677, 1, 0
    %v806 = vsel %vm678, 1, 0
    %v807 = vsel %vm679, 1, 0
    %v808 = vcvt.s32.f32 %v680
    %v809 = vcvt.s32.f32 %v681
    %v810 = vcvt.s32.f32 %v682
    %v811 = vcvt.s32.f32 %v683
    %v812 = vcvt.s32.f32 %v684
    %v813 = vcvt.s32.f32 %v685
    %v814 = vcvt.s32.f32 %v686
    %v815 = vcvt.s32.f32 %v687
    %v816 = vcvt.s32.f32 %v688
    %v817 = vcvt.s32.f32 %v689
    %v818 = vcvt.s32.f32 %v690
    %v819 = vcvt.s32.f32 %v691
    %v820 = vcvt.s32.f32 %v692
    %v821 = vcvt.s32.f32 %v693
    %v822 = vcvt.s32.f32 %v694
    %v823 = vcvt.s32.f32 %v695
    %v824 = vcvt.s32.f32 %v696
    %v825 = vcvt.s32.f32 %v697
    %v826 = vcvt.s32.f32 %v698
    %v827 = vcvt.s32.f32 %v699
    %v828 = vcvt.s32.f32 %v700
    %v829 = vcvt.s32.f32 %v701
    %v830 = vcvt.s32.f32 %v702
    %v831 = vcvt.s32.f32 %v703
    %v832 = vcvt.s32.f32 %v704
    %v833 = vcvt.s32.f32 %v705
    %v834 = vcvt.s32.f32 %v706
    %v835 = vcvt.s32.f32 %v707
    %v836 = vcvt.s32.f32 %v708
    %v837 = vcvt.s32.f32 %v709
    %v838 = vcvt.s32.f32 %v710
    %v839 = vcvt.s32.f32 %v711
    %v840 = vcvt.s32.f32 %v712
    %v841 = vcvt.s32.f32 %v713
    %v842 = vcvt.s32.f32 %v714
    %v843 = vcvt.s32.f32 %v715
    %v844 = vcvt.s32.f32 %v716
    %v845 = vcvt.s32.f32 %v717
    %v846 = vcvt.s32.f32 %v718
    %v847 = vcvt.s32.f32 %v719
    %v848 = vcvt.s32.f32 %v720
    %v849 = vcvt.s32.f32 %v721
    %v850 = vcvt.s32.f32 %v722
    %v851 = vcvt.s32.f32 %v723
    %v852 = vcvt.s32.f32 %v724
    %v853 = vcvt.s32.f32 %v725
    %v854 = vcvt.s32.f32 %v726
    %v855 = vcvt.s32.f32 %v727
    %v856 = vcvt.s32.f32 %v728
    %v857 = vcvt.s32.f32 %v729
    %v858 = vcvt.s32.f32 %v730
    %v859 = vcvt.s32.f32 %v731
    %v860 = vcvt.s32.f32 %v732
    %v861 = vcvt.s32.f32 %v733
    %v862 = vcvt.s32.f32 %v734
    %v863 = vcvt.s32.f32 %v735
    %v864 = vcvt.s32.f32 %v736
    %v865 = vcvt.s32.f32 %v737
    %v866 = vcvt.s32.f32 %v738
    %v867 = vcvt.s32.f32 %v739
    %v868 = vcvt.s32.f32 %v740
    %v869 = vcvt.s32.f32 %v741
    %v870 = vcvt.s32.f32 %v742
    %v871 = vcvt.s32.f32 %v743
    %v872 = vcvt.s32.f32 %v744
    %v873 = vcvt.s32.f32 %v745
    %v874 = vcvt.s32.f32 %v746
    %v875 = vcvt.s32.f32 %v747
    %v876 = vcvt.s32.f32 %v748
    %v877 = vcvt.s32.f32 %v749
    %v878 = vcvt.s32.f32 %v750
    %v879 = vcvt.s32.f32 %v751
    %v880 = vcvt.s32.f32 %v752
    %v881 = vcvt.s32.f32 %v753
    %v882 = vcvt.s32.f32 %v754
    %v883 = vcvt.s32.f32 %v755
    %v884 = vcvt.s32.f32 %v756
    %v885 = vcvt.s32.f32 %v757
    %v886 = vcvt.s32.f32 %v758
    %v887 = vcvt.s32.f32 %v759
    %v888 = vcvt.s32.f32 %v760
    %v889 = vcvt.s32.f32 %v761
    %v890 = vcvt.s32.f32 %v762
    %v891 = vcvt.s32.f32 %v763
    %v892 = vcvt.s32.f32 %v764
    %v893 = vcvt.s32.f32 %v765
    %v894 = vcvt.s32.f32 %v766
    %v895 = vcvt.s32.f32 %v767
    %v896 = vcvt.s32.f32 %v768
    %v897 = vcvt.s32.f32 %v769
    %v898 = vcvt.s32.f32 %v770
    %v899 = vcvt.s32.f32 %v771
    %v900 = vcvt.s32.f32 %v772
    %v901 = vcvt.s32.f32 %v773
    %v902 = vcvt.s32.f32 %v774
    %v903 = vcvt.s32.f32 %v775
    %v904 = vcvt.s32.f32 %v776
    %v905 = vcvt.s32.f32 %v777
    %v906 = vcvt.s32.f32 %v778
    %v907 = vcvt.s32.f32 %v779
    %v908 = vcvt.s32.f32 %v780
    %v909 = vcvt.s32.f32 %v781
    %v910 = vcvt.s32.f32 %v782
    %v911 = vcvt.s32.f32 %v783
    %v912 = vcvt.s32.f32 %v784
    %v913 = vcvt.s32.f32 %v785
    %v914 = vcvt.s32.f32 %v786
    %v915 = vcvt.s32.f32 %v787
    %v916 = vcvt.s32.f32 %v788
    %v917 = vcvt.s32.f32 %v789
    %v918 = vcvt.s32.f32 %v790
    %v919 = vcvt.s32.f32 %v791
    %v920 = vcvt.s32.f32 %v792
    %v921 = vcvt.s32.f32 %v793
    %v922 = vcvt.s32.f32 %v794
    %v923 = vcvt.s32.f32 %v795
    %v924 = vcvt.s32.f32 %v796
    %v925 = vcvt.s32.f32 %v797
    %v926 = vcvt.s32.f32 %v798
    %v927 = vcvt.s32.f32 %v799
    %v928 = vcvt.s32.f32 %v800
    %v929 = vcvt.s32.f32 %v801
    %v930 = vcvt.s32.f32 %v802
    %v931 = vcvt.s32.f32 %v803
    %v932 = vcvt.s32.f32 %v804
    %v933 = vcvt.s32.f32 %v805
    %v934 = vcvt.s32.f32 %v806
    %v935 = vcvt.s32.f32 %v807
    %v936 = vpack.c.bf16 %v809, %v808
    %v937 = vpack.c.bf16 %v811, %v810
    %v938 = vpack.c.bf16 %v813, %v812
    %v939 = vpack.c.bf16 %v815, %v814
    %v940 = vpack.c.bf16 %v817, %v816
    %v941 = vpack.c.bf16 %v819, %v818
    %v942 = vpack.c.bf16 %v821, %v820
    %v943 = vpack.c.bf16 %v823, %v822
    %v944 = vpack.c.bf16 %v825, %v824
    %v945 = vpack.c.bf16 %v827, %v826
    %v946 = vpack.c.bf16 %v829, %v828
    %v947 = vpack.c.bf16 %v831, %v830
    %v948 = vpack.c.bf16 %v833, %v832
    %v949 = vpack.c.bf16 %v835, %v834
    %v950 = vpack.c.bf16 %v837, %v836
    %v951 = vpack.c.bf16 %v839, %v838
    %v952 = vpack.c.bf16 %v841, %v840
    %v953 = vpack.c.bf16 %v843, %v842
    %v954 = vpack.c.bf16 %v845, %v844
    %v955 = vpack.c.bf16 %v847, %v846
    %v956 = vpack.c.bf16 %v849, %v848
    %v957 = vpack.c.bf16 %v851, %v850
    %v958 = vpack.c.bf16 %v853, %v852
    %v959 = vpack.c.bf16 %v855, %v854
    %v960 = vpack.c.bf16 %v857, %v856
    %v961 = vpack.c.bf16 %v859, %v858
    %v962 = vpack.c.bf16 %v861, %v860
    %v963 = vpack.c.bf16 %v863, %v862
    %v964 = vpack.c.bf16 %v865, %v864
    %v965 = vpack.c.bf16 %v867, %v866
    %v966 = vpack.c.bf16 %v869, %v868
    %v967 = vpack.c.bf16 %v871, %v870
    %v968 = vpack.c.bf16 %v873, %v872
    %v969 = vpack.c.bf16 %v875, %v874
    %v970 = vpack.c.bf16 %v877, %v876
    %v971 = vpack.c.bf16 %v879, %v878
    %v972 = vpack.c.bf16 %v881, %v880
    %v973 = vpack.c.bf16 %v883, %v882
    %v974 = vpack.c.bf16 %v885, %v884
    %v975 = vpack.c.bf16 %v887, %v886
    %v976 = vpack.c.bf16 %v889, %v888
    %v977 = vpack.c.bf16 %v891, %v890
    %v978 = vpack.c.bf16 %v893, %v892
    %v979 = vpack.c.bf16 %v895, %v894
    %v980 = vpack.c.bf16 %v897, %v896
    %v981 = vpack.c.bf16 %v899, %v898
    %v982 = vpack.c.bf16 %v901, %v900
    %v983 = vpack.c.bf16 %v903, %v902
    %v984 = vpack.c.bf16 %v905, %v904
    %v985 = vpack.c.bf16 %v907, %v906
    %v986 = vpack.c.bf16 %v909, %v908
    %v987 = vpack.c.bf16 %v911, %v910
    %v988 = vpack.c.bf16 %v913, %v912
    %v989 = vpack.c.bf16 %v915, %v914
    %v990 = vpack.c.bf16 %v917, %v916
    %v991 = vpack.c.bf16 %v919, %v918
    %v992 = vpack.c.bf16 %v921, %v920
    %v993 = vpack.c.bf16 %v923, %v922
    %v994 = vpack.c.bf16 %v925, %v924
    %v995 = vpack.c.bf16 %v927, %v926
    %v996 = vpack.c.bf16 %v929, %v928
    %v997 = vpack.c.bf16 %v931, %v930
    %v998 = vpack.c.bf16 %v933, %v932
    %v999 = vpack.c.bf16 %v935, %v934
    %v1000 = vlaneseq
    %v1001 = vshrl.u32 %v1000, 7
    %v1002 = vadd.s32 %v1001, 8
    %v1003 = vadd.s32 %v1001, 16
    %v1004 = vadd.s32 %v1001, 24
    %v1005 = vadd.s32 %v1001, 32
    %v1006 = vadd.s32 %v1001, 40
    %v1007 = vadd.s32 %v1001, 48
    %v1008 = vadd.s32 %v1001, 56
    %v1009 = vadd.s32 %v1001, 64
    %v1010 = vadd.s32 %v1001, 72
    %v1011 = vadd.s32 %v1001, 80
    %v1012 = vadd.s32 %v1001, 88
    %v1013 = vadd.s32 %v1001, 96
    %v1014 = vadd.s32 %v1001, 104
    %v1015 = vadd.s32 %v1001, 112
    %v1016 = vadd.s32 %v1001, 120
    %v1017 = vld [vmem:[%s1] sm:$0xff]
    %v1018 = vperm.slane %v1017, 0
    %v1019 = vperm.slane %v1017, 1
    %v1020 = vperm.slane %v1017, 2
    %v1021 = vperm.slane %v1017, 3
    %v1022 = vperm.slane %v1017, 4
    %v1023 = vperm.slane %v1017, 5
    %v1024 = vperm.slane %v1017, 6
    %v1025 = vperm.slane %v1017, 7
    %vm1026 = vcmp.eq.s32.totalorder %v1001, %v1018
    %vm1027 = vcmp.eq.s32.totalorder %v1001, %v1019
    %vm1028 = vcmp.eq.s32.totalorder %v1001, %v1020
    %vm1029 = vcmp.eq.s32.totalorder %v1001, %v1021
    %vm1030 = vcmp.eq.s32.totalorder %v1001, %v1022
    %vm1031 = vcmp.eq.s32.totalorder %v1001, %v1023
    %vm1032 = vcmp.eq.s32.totalorder %v1001, %v1024
    %vm1033 = vcmp.eq.s32.totalorder %v1001, %v1025
    %vm1034 = vcmp.eq.s32.totalorder %v1002, %v1018
    %vm1035 = vcmp.eq.s32.totalorder %v1002, %v1019
    %vm1036 = vcmp.eq.s32.totalorder %v1002, %v1020
    %vm1037 = vcmp.eq.s32.totalorder %v1002, %v1021
    %vm1038 = vcmp.eq.s32.totalorder %v1002, %v1022
    %vm1039 = vcmp.eq.s32.totalorder %v1002, %v1023
    %vm1040 = vcmp.eq.s32.totalorder %v1002, %v1024
    %vm1041 = vcmp.eq.s32.totalorder %v1002, %v1025
    %vm1042 = vcmp.eq.s32.totalorder %v1003, %v1018
    %vm1043 = vcmp.eq.s32.totalorder %v1003, %v1019
    %vm1044 = vcmp.eq.s32.totalorder %v1003, %v1020
    %vm1045 = vcmp.eq.s32.totalorder %v1003, %v1021
    %vm1046 = vcmp.eq.s32.totalorder %v1003, %v1022
    %vm1047 = vcmp.eq.s32.totalorder %v1003, %v1023
    %vm1048 = vcmp.eq.s32.totalorder %v1003, %v1024
    %vm1049 = vcmp.eq.s32.totalorder %v1003, %v1025
    %vm1050 = vcmp.eq.s32.totalorder %v1004, %v1018
    %vm1051 = vcmp.eq.s32.totalorder %v1004, %v1019
    %vm1052 = vcmp.eq.s32.totalorder %v1004, %v1020
    %vm1053 = vcmp.eq.s32.totalorder %v1004, %v1021
    %vm1054 = vcmp.eq.s32.totalorder %v1004, %v1022
    %vm1055 = vcmp.eq.s32.totalorder %v1004, %v1023
    %vm1056 = vcmp.eq.s32.totalorder %v1004, %v1024
    %vm1057 = vcmp.eq.s32.totalorder %v1004, %v1025
    %vm1058 = vcmp.eq.s32.totalorder %v1005, %v1018
    %vm1059 = vcmp.eq.s32.totalorder %v1005, %v1019
    %vm1060 = vcmp.eq.s32.totalorder %v1005, %v1020
    %vm1061 = vcmp.eq.s32.totalorder %v1005, %v1021
    %vm1062 = vcmp.eq.s32.totalorder %v1005, %v1022
    %vm1063 = vcmp.eq.s32.totalorder %v1005, %v1023
    %vm1064 = vcmp.eq.s32.totalorder %v1005, %v1024
    %vm1065 = vcmp.eq.s32.totalorder %v1005, %v1025
    %vm1066 = vcmp.eq.s32.totalorder %v1006, %v1018
    %vm1067 = vcmp.eq.s32.totalorder %v1006, %v1019
    %vm1068 = vcmp.eq.s32.totalorder %v1006, %v1020
    %vm1069 = vcmp.eq.s32.totalorder %v1006, %v1021
    %vm1070 = vcmp.eq.s32.totalorder %v1006, %v1022
    %vm1071 = vcmp.eq.s32.totalorder %v1006, %v1023
    %vm1072 = vcmp.eq.s32.totalorder %v1006, %v1024
    %vm1073 = vcmp.eq.s32.totalorder %v1006, %v1025
    %vm1074 = vcmp.eq.s32.totalorder %v1007, %v1018
    %vm1075 = vcmp.eq.s32.totalorder %v1007, %v1019
    %vm1076 = vcmp.eq.s32.totalorder %v1007, %v1020
    %vm1077 = vcmp.eq.s32.totalorder %v1007, %v1021
    %vm1078 = vcmp.eq.s32.totalorder %v1007, %v1022
    %vm1079 = vcmp.eq.s32.totalorder %v1007, %v1023
    %vm1080 = vcmp.eq.s32.totalorder %v1007, %v1024
    %vm1081 = vcmp.eq.s32.totalorder %v1007, %v1025
    %vm1082 = vcmp.eq.s32.totalorder %v1008, %v1018
    %vm1083 = vcmp.eq.s32.totalorder %v1008, %v1019
    %vm1084 = vcmp.eq.s32.totalorder %v1008, %v1020
    %vm1085 = vcmp.eq.s32.totalorder %v1008, %v1021
    %vm1086 = vcmp.eq.s32.totalorder %v1008, %v1022
    %vm1087 = vcmp.eq.s32.totalorder %v1008, %v1023
    %vm1088 = vcmp.eq.s32.totalorder %v1008, %v1024
    %vm1089 = vcmp.eq.s32.totalorder %v1008, %v1025
    %vm1090 = vcmp.eq.s32.totalorder %v1009, %v1018
    %vm1091 = vcmp.eq.s32.totalorder %v1009, %v1019
    %vm1092 = vcmp.eq.s32.totalorder %v1009, %v1020
    %vm1093 = vcmp.eq.s32.totalorder %v1009, %v1021
    %vm1094 = vcmp.eq.s32.totalorder %v1009, %v1022
    %vm1095 = vcmp.eq.s32.totalorder %v1009, %v1023
    %vm1096 = vcmp.eq.s32.totalorder %v1009, %v1024
    %vm1097 = vcmp.eq.s32.totalorder %v1009, %v1025
    %vm1098 = vcmp.eq.s32.totalorder %v1010, %v1018
    %vm1099 = vcmp.eq.s32.totalorder %v1010, %v1019
    %vm1100 = vcmp.eq.s32.totalorder %v1010, %v1020
    %vm1101 = vcmp.eq.s32.totalorder %v1010, %v1021
    %vm1102 = vcmp.eq.s32.totalorder %v1010, %v1022
    %vm1103 = vcmp.eq.s32.totalorder %v1010, %v1023
    %vm1104 = vcmp.eq.s32.totalorder %v1010, %v1024
    %vm1105 = vcmp.eq.s32.totalorder %v1010, %v1025
    %vm1106 = vcmp.eq.s32.totalorder %v1011, %v1018
    %vm1107 = vcmp.eq.s32.totalorder %v1011, %v1019
    %vm1108 = vcmp.eq.s32.totalorder %v1011, %v1020
    %vm1109 = vcmp.eq.s32.totalorder %v1011, %v1021
    %vm1110 = vcmp.eq.s32.totalorder %v1011, %v1022
    %vm1111 = vcmp.eq.s32.totalorder %v1011, %v1023
    %vm1112 = vcmp.eq.s32.totalorder %v1011, %v1024
    %vm1113 = vcmp.eq.s32.totalorder %v1011, %v1025
    %vm1114 = vcmp.eq.s32.totalorder %v1012, %v1018
    %vm1115 = vcmp.eq.s32.totalorder %v1012, %v1019
    %vm1116 = vcmp.eq.s32.totalorder %v1012, %v1020
    %vm1117 = vcmp.eq.s32.totalorder %v1012, %v1021
    %vm1118 = vcmp.eq.s32.totalorder %v1012, %v1022
    %vm1119 = vcmp.eq.s32.totalorder %v1012, %v1023
    %vm1120 = vcmp.eq.s32.totalorder %v1012, %v1024
    %vm1121 = vcmp.eq.s32.totalorder %v1012, %v1025
    %vm1122 = vcmp.eq.s32.totalorder %v1013, %v1018
    %vm1123 = vcmp.eq.s32.totalorder %v1013, %v1019
    %vm1124 = vcmp.eq.s32.totalorder %v1013, %v1020
    %vm1125 = vcmp.eq.s32.totalorder %v1013, %v1021
    %vm1126 = vcmp.eq.s32.totalorder %v1013, %v1022
    %vm1127 = vcmp.eq.s32.totalorder %v1013, %v1023
    %vm1128 = vcmp.eq.s32.totalorder %v1013, %v1024
    %vm1129 = vcmp.eq.s32.totalorder %v1013, %v1025
    %vm1130 = vcmp.eq.s32.totalorder %v1014, %v1018
    %vm1131 = vcmp.eq.s32.totalorder %v1014, %v1019
    %vm1132 = vcmp.eq.s32.totalorder %v1014, %v1020
    %vm1133 = vcmp.eq.s32.totalorder %v1014, %v1021
    %vm1134 = vcmp.eq.s32.totalorder %v1014, %v1022
    %vm1135 = vcmp.eq.s32.totalorder %v1014, %v1023
    %vm1136 = vcmp.eq.s32.totalorder %v1014, %v1024
    %vm1137 = vcmp.eq.s32.totalorder %v1014, %v1025
    %vm1138 = vcmp.eq.s32.totalorder %v1015, %v1018
    %vm1139 = vcmp.eq.s32.totalorder %v1015, %v1019
    %vm1140 = vcmp.eq.s32.totalorder %v1015, %v1020
    %vm1141 = vcmp.eq.s32.totalorder %v1015, %v1021
    %vm1142 = vcmp.eq.s32.totalorder %v1015, %v1022
    %vm1143 = vcmp.eq.s32.totalorder %v1015, %v1023
    %vm1144 = vcmp.eq.s32.totalorder %v1015, %v1024
    %vm1145 = vcmp.eq.s32.totalorder %v1015, %v1025
    %vm1146 = vcmp.eq.s32.totalorder %v1016, %v1018
    %vm1147 = vcmp.eq.s32.totalorder %v1016, %v1019
    %vm1148 = vcmp.eq.s32.totalorder %v1016, %v1020
    %vm1149 = vcmp.eq.s32.totalorder %v1016, %v1021
    %vm1150 = vcmp.eq.s32.totalorder %v1016, %v1022
    %vm1151 = vcmp.eq.s32.totalorder %v1016, %v1023
    %vm1152 = vcmp.eq.s32.totalorder %v1016, %v1024
    %vm1153 = vcmp.eq.s32.totalorder %v1016, %v1025
    %v1154 = vsel %vm1026, 1, 0
    %v1155 = vsel %vm1027, 1, 0
    %v1156 = vsel %vm1028, 1, 0
    %v1157 = vsel %vm1029, 1, 0
    %v1158 = vsel %vm1030, 1, 0
    %v1159 = vsel %vm1031, 1, 0
    %v1160 = vsel %vm1032, 1, 0
    %v1161 = vsel %vm1033, 1, 0
    %v1162 = vsel %vm1034, 1, 0
    %v1163 = vsel %vm1035, 1, 0
    %v1164 = vsel %vm1036, 1, 0
    %v1165 = vsel %vm1037, 1, 0
    %v1166 = vsel %vm1038, 1, 0
    %v1167 = vsel %vm1039, 1, 0
    %v1168 = vsel %vm1040, 1, 0
    %v1169 = vsel %vm1041, 1, 0
    %v1170 = vsel %vm1042, 1, 0
    %v1171 = vsel %vm1043, 1, 0
    %v1172 = vsel %vm1044, 1, 0
    %v1173 = vsel %vm1045, 1, 0
    %v1174 = vsel %vm1046, 1, 0
    %v1175 = vsel %vm1047, 1, 0
    %v1176 = vsel %vm1048, 1, 0
    %v1177 = vsel %vm1049, 1, 0
    %v1178 = vsel %vm1050, 1, 0
    %v1179 = vsel %vm1051, 1, 0
    %v1180 = vsel %vm1052, 1, 0
    %v1181 = vsel %vm1053, 1, 0
    %v1182 = vsel %vm1054, 1, 0
    %v1183 = vsel %vm1055, 1, 0
    %v1184 = vsel %vm1056, 1, 0
    %v1185 = vsel %vm1057, 1, 0
    %v1186 = vsel %vm1058, 1, 0
    %v1187 = vsel %vm1059, 1, 0
    %v1188 = vsel %vm1060, 1, 0
    %v1189 = vsel %vm1061, 1, 0
    %v1190 = vsel %vm1062, 1, 0
    %v1191 = vsel %vm1063, 1, 0
    %v1192 = vsel %vm1064, 1, 0
    %v1193 = vsel %vm1065, 1, 0
    %v1194 = vsel %vm1066, 1, 0
    %v1195 = vsel %vm1067, 1, 0
    %v1196 = vsel %vm1068, 1, 0
    %v1197 = vsel %vm1069, 1, 0
    %v1198 = vsel %vm1070, 1, 0
    %v1199 = vsel %vm1071, 1, 0
    %v1200 = vsel %vm1072, 1, 0
    %v1201 = vsel %vm1073, 1, 0
    %v1202 = vsel %vm1074, 1, 0
    %v1203 = vsel %vm1075, 1, 0
    %v1204 = vsel %vm1076, 1, 0
    %v1205 = vsel %vm1077, 1, 0
    %v1206 = vsel %vm1078, 1, 0
    %v1207 = vsel %vm1079, 1, 0
    %v1208 = vsel %vm1080, 1, 0
    %v1209 = vsel %vm1081, 1, 0
    %v1210 = vsel %vm1082, 1, 0
    %v1211 = vsel %vm1083, 1, 0
    %v1212 = vsel %vm1084, 1, 0
    %v1213 = vsel %vm1085, 1, 0
    %v1214 = vsel %vm1086, 1, 0
    %v1215 = vsel %vm1087, 1, 0
    %v1216 = vsel %vm1088, 1, 0
    %v1217 = vsel %vm1089, 1, 0
    %v1218 = vsel %vm1090, 1, 0
    %v1219 = vsel %vm1091, 1, 0
    %v1220 = vsel %vm1092, 1, 0
    %v1221 = vsel %vm1093, 1, 0
    %v1222 = vsel %vm1094, 1, 0
    %v1223 = vsel %vm1095, 1, 0
    %v1224 = vsel %vm1096, 1, 0
    %v1225 = vsel %vm1097, 1, 0
    %v1226 = vsel %vm1098, 1, 0
    %v1227 = vsel %vm1099, 1, 0
    %v1228 = vsel %vm1100, 1, 0
    %v1229 = vsel %vm1101, 1, 0
    %v1230 = vsel %vm1102, 1, 0
    %v1231 = vsel %vm1103, 1, 0
    %v1232 = vsel %vm1104, 1, 0
    %v1233 = vsel %vm1105, 1, 0
    %v1234 = vsel %vm1106, 1, 0
    %v1235 = vsel %vm1107, 1, 0
    %v1236 = vsel %vm1108, 1, 0
    %v1237 = vsel %vm1109, 1, 0
    %v1238 = vsel %vm1110, 1, 0
    %v1239 = vsel %vm1111, 1, 0
    %v1240 = vsel %vm1112, 1, 0
    %v1241 = vsel %vm1113, 1, 0
    %v1242 = vsel %vm1114, 1, 0
    %v1243 = vsel %vm1115, 1, 0
    %v1244 = vsel %vm1116, 1, 0
    %v1245 = vsel %vm1117, 1, 0
    %v1246 = vsel %vm1118, 1, 0
    %v1247 = vsel %vm1119, 1, 0
    %v1248 = vsel %vm1120, 1, 0
    %v1249 = vsel %vm1121, 1, 0
    %v1250 = vsel %vm1122, 1, 0
    %v1251 = vsel %vm1123, 1, 0
    %v1252 = vsel %vm1124, 1, 0
    %v1253 = vsel %vm1125, 1, 0
    %v1254 = vsel %vm1126, 1, 0
    %v1255 = vsel %vm1127, 1, 0
    %v1256 = vsel %vm1128, 1, 0
    %v1257 = vsel %vm1129, 1, 0
    %v1258 = vsel %vm1130, 1, 0
    %v1259 = vsel %vm1131, 1, 0
    %v1260 = vsel %vm1132, 1, 0
    %v1261 = vsel %vm1133, 1, 0
    %v1262 = vsel %vm1134, 1, 0
    %v1263 = vsel %vm1135, 1, 0
    %v1264 = vsel %vm1136, 1, 0
    %v1265 = vsel %vm1137, 1, 0
    %v1266 = vsel %vm1138, 1, 0
    %v1267 = vsel %vm1139, 1, 0
    %v1268 = vsel %vm1140, 1, 0
    %v1269 = vsel %vm1141, 1, 0
    %v1270 = vsel %vm1142, 1, 0
    %v1271 = vsel %vm1143, 1, 0
    %v1272 = vsel %vm1144, 1, 0
    %v1273 = vsel %vm1145, 1, 0
    %v1274 = vsel %vm1146, 1, 0
    %v1275 = vsel %vm1147, 1, 0
    %v1276 = vsel %vm1148, 1, 0
    %v1277 = vsel %vm1149, 1, 0
    %v1278 = vsel %vm1150, 1, 0
    %v1279 = vsel %vm1151, 1, 0
    %v1280 = vsel %vm1152, 1, 0
    %v1281 = vsel %vm1153, 1, 0
    %v1282 = vcvt.s32.f32 %v1154
    %v1283 = vcvt.s32.f32 %v1155
    %v1284 = vcvt.s32.f32 %v1156
    %v1285 = vcvt.s32.f32 %v1157
    %v1286 = vcvt.s32.f32 %v1158
    %v1287 = vcvt.s32.f32 %v1159
    %v1288 = vcvt.s32.f32 %v1160
    %v1289 = vcvt.s32.f32 %v1161
    %v1290 = vcvt.s32.f32 %v1162
    %v1291 = vcvt.s32.f32 %v1163
    %v1292 = vcvt.s32.f32 %v1164
    %v1293 = vcvt.s32.f32 %v1165
    %v1294 = vcvt.s32.f32 %v1166
    %v1295 = vcvt.s32.f32 %v1167
    %v1296 = vcvt.s32.f32 %v1168
    %v1297 = vcvt.s32.f32 %v1169
    %v1298 = vcvt.s32.f32 %v1170
    %v1299 = vcvt.s32.f32 %v1171
    %v1300 = vcvt.s32.f32 %v1172
    %v1301 = vcvt.s32.f32 %v1173
    %v1302 = vcvt.s32.f32 %v1174
    %v1303 = vcvt.s32.f32 %v1175
    %v1304 = vcvt.s32.f32 %v1176
    %v1305 = vcvt.s32.f32 %v1177
    %v1306 = vcvt.s32.f32 %v1178
    %v1307 = vcvt.s32.f32 %v1179
    %v1308 = vcvt.s32.f32 %v1180
    %v1309 = vcvt.s32.f32 %v1181
    %v1310 = vcvt.s32.f32 %v1182
    %v1311 = vcvt.s32.f32 %v1183
    %v1312 = vcvt.s32.f32 %v1184
    %v1313 = vcvt.s32.f32 %v1185
    %v1314 = vcvt.s32.f32 %v1186
    %v1315 = vcvt.s32.f32 %v1187
    %v1316 = vcvt.s32.f32 %v1188
    %v1317 = vcvt.s32.f32 %v1189
    %v1318 = vcvt.s32.f32 %v1190
    %v1319 = vcvt.s32.f32 %v1191
    %v1320 = vcvt.s32.f32 %v1192
    %v1321 = vcvt.s32.f32 %v1193
    %v1322 = vcvt.s32.f32 %v1194
    %v1323 = vcvt.s32.f32 %v1195
    %v1324 = vcvt.s32.f32 %v1196
    %v1325 = vcvt.s32.f32 %v1197
    %v1326 = vcvt.s32.f32 %v1198
    %v1327 = vcvt.s32.f32 %v1199
    %v1328 = vcvt.s32.f32 %v1200
    %v1329 = vcvt.s32.f32 %v1201
    %v1330 = vcvt.s32.f32 %v1202
    %v1331 = vcvt.s32.f32 %v1203
    %v1332 = vcvt.s32.f32 %v1204
    %v1333 = vcvt.s32.f32 %v1205
    %v1334 = vcvt.s32.f32 %v1206
    %v1335 = vcvt.s32.f32 %v1207
    %v1336 = vcvt.s32.f32 %v1208
    %v1337 = vcvt.s32.f32 %v1209
    %v1338 = vcvt.s32.f32 %v1210
    %v1339 = vcvt.s32.f32 %v1211
    %v1340 = vcvt.s32.f32 %v1212
    %v1341 = vcvt.s32.f32 %v1213
    %v1342 = vcvt.s32.f32 %v1214
    %v1343 = vcvt.s32.f32 %v1215
    %v1344 = vcvt.s32.f32 %v1216
    %v1345 = vcvt.s32.f32 %v1217
    %v1346 = vcvt.s32.f32 %v1218
    %v1347 = vcvt.s32.f32 %v1219
    %v1348 = vcvt.s32.f32 %v1220
    %v1349 = vcvt.s32.f32 %v1221
    %v1350 = vcvt.s32.f32 %v1222
    %v1351 = vcvt.s32.f32 %v1223
    %v1352 = vcvt.s32.f32 %v1224
    %v1353 = vcvt.s32.f32 %v1225
    %v1354 = vcvt.s32.f32 %v1226
    %v1355 = vcvt.s32.f32 %v1227
    %v1356 = vcvt.s32.f32 %v1228
    %v1357 = vcvt.s32.f32 %v1229
    %v1358 = vcvt.s32.f32 %v1230
    %v1359 = vcvt.s32.f32 %v1231
    %v1360 = vcvt.s32.f32 %v1232
    %v1361 = vcvt.s32.f32 %v1233
    %v1362 = vcvt.s32.f32 %v1234
    %v1363 = vcvt.s32.f32 %v1235
    %v1364 = vcvt.s32.f32 %v1236
    %v1365 = vcvt.s32.f32 %v1237
    %v1366 = vcvt.s32.f32 %v1238
    %v1367 = vcvt.s32.f32 %v1239
    %v1368 = vcvt.s32.f32 %v1240
    %v1369 = vcvt.s32.f32 %v1241
    %v1370 = vcvt.s32.f32 %v1242
    %v1371 = vcvt.s32.f32 %v1243
    %v1372 = vcvt.s32.f32 %v1244
    %v1373 = vcvt.s32.f32 %v1245
    %v1374 = vcvt.s32.f32 %v1246
    %v1375 = vcvt.s32.f32 %v1247
    %v1376 = vcvt.s32.f32 %v1248
    %v1377 = vcvt.s32.f32 %v1249
    %v1378 = vcvt.s32.f32 %v1250
    %v1379 = vcvt.s32.f32 %v1251
    %v1380 = vcvt.s32.f32 %v1252
    %v1381 = vcvt.s32.f32 %v1253
    %v1382 = vcvt.s32.f32 %v1254
    %v1383 = vcvt.s32.f32 %v1255
    %v1384 = vcvt.s32.f32 %v1256
    %v1385 = vcvt.s32.f32 %v1257
    %v1386 = vcvt.s32.f32 %v1258
    %v1387 = vcvt.s32.f32 %v1259
    %v1388 = vcvt.s32.f32 %v1260
    %v1389 = vcvt.s32.f32 %v1261
    %v1390 = vcvt.s32.f32 %v1262
    %v1391 = vcvt.s32.f32 %v1263
    %v1392 = vcvt.s32.f32 %v1264
    %v1393 = vcvt.s32.f32 %v1265
    %v1394 = vcvt.s32.f32 %v1266
    %v1395 = vcvt.s32.f32 %v1267
    %v1396 = vcvt.s32.f32 %v1268
    %v1397 = vcvt.s32.f32 %v1269
    %v1398 = vcvt.s32.f32 %v1270
    %v1399 = vcvt.s32.f32 %v1271
    %v1400 = vcvt.s32.f32 %v1272
    %v1401 = vcvt.s32.f32 %v1273
    %v1402 = vcvt.s32.f32 %v1274
    %v1403 = vcvt.s32.f32 %v1275
    %v1404 = vcvt.s32.f32 %v1276
    %v1405 = vcvt.s32.f32 %v1277
    %v1406 = vcvt.s32.f32 %v1278
    %v1407 = vcvt.s32.f32 %v1279
    %v1408 = vcvt.s32.f32 %v1280
    %v1409 = vcvt.s32.f32 %v1281
    %v1410 = vpack.c.bf16 %v1290, %v1282
    %v1411 = vpack.c.bf16 %v1291, %v1283
    %v1412 = vpack.c.bf16 %v1292, %v1284
    %v1413 = vpack.c.bf16 %v1293, %v1285
    %v1414 = vpack.c.bf16 %v1294, %v1286
    %v1415 = vpack.c.bf16 %v1295, %v1287
    %v1416 = vpack.c.bf16 %v1296, %v1288
    %v1417 = vpack.c.bf16 %v1297, %v1289
    %v1418 = vpack.c.bf16 %v1306, %v1298
    %v1419 = vpack.c.bf16 %v1307, %v1299
    %v1420 = vpack.c.bf16 %v1308, %v1300
    %v1421 = vpack.c.bf16 %v1309, %v1301
    %v1422 = vpack.c.bf16 %v1310, %v1302
    %v1423 = vpack.c.bf16 %v1311, %v1303
    %v1424 = vpack.c.bf16 %v1312, %v1304
    %v1425 = vpack.c.bf16 %v1313, %v1305
    %v1426 = vpack.c.bf16 %v1322, %v1314
    %v1427 = vpack.c.bf16 %v1323, %v1315
    %v1428 = vpack.c.bf16 %v1324, %v1316
    %v1429 = vpack.c.bf16 %v1325, %v1317
    %v1430 = vpack.c.bf16 %v1326, %v1318
    %v1431 = vpack.c.bf16 %v1327, %v1319
    %v1432 = vpack.c.bf16 %v1328, %v1320
    %v1433 = vpack.c.bf16 %v1329, %v1321
    %v1434 = vpack.c.bf16 %v1338, %v1330
    %v1435 = vpack.c.bf16 %v1339, %v1331
    %v1436 = vpack.c.bf16 %v1340, %v1332
    %v1437 = vpack.c.bf16 %v1341, %v1333
    %v1438 = vpack.c.bf16 %v1342, %v1334
    %v1439 = vpack.c.bf16 %v1343, %v1335
    %v1440 = vpack.c.bf16 %v1344, %v1336
    %v1441 = vpack.c.bf16 %v1345, %v1337
    %v1442 = vpack.c.bf16 %v1354, %v1346
    %v1443 = vpack.c.bf16 %v1355, %v1347
    %v1444 = vpack.c.bf16 %v1356, %v1348
    %v1445 = vpack.c.bf16 %v1357, %v1349
    %v1446 = vpack.c.bf16 %v1358, %v1350
    %v1447 = vpack.c.bf16 %v1359, %v1351
    %v1448 = vpack.c.bf16 %v1360, %v1352
    %v1449 = vpack.c.bf16 %v1361, %v1353
    %v1450 = vpack.c.bf16 %v1370, %v1362
    %v1451 = vpack.c.bf16 %v1371, %v1363
    %v1452 = vpack.c.bf16 %v1372, %v1364
    %v1453 = vpack.c.bf16 %v1373, %v1365
    %v1454 = vpack.c.bf16 %v1374, %v1366
    %v1455 = vpack.c.bf16 %v1375, %v1367
    %v1456 = vpack.c.bf16 %v1376, %v1368
    %v1457 = vpack.c.bf16 %v1377, %v1369
    %v1458 = vpack.c.bf16 %v1386, %v1378
    %v1459 = vpack.c.bf16 %v1387, %v1379
    %v1460 = vpack.c.bf16 %v1388, %v1380
    %v1461 = vpack.c.bf16 %v1389, %v1381
    %v1462 = vpack.c.bf16 %v1390, %v1382
    %v1463 = vpack.c.bf16 %v1391, %v1383
    %v1464 = vpack.c.bf16 %v1392, %v1384
    %v1465 = vpack.c.bf16 %v1393, %v1385
    %v1466 = vpack.c.bf16 %v1402, %v1394
    %v1467 = vpack.c.bf16 %v1403, %v1395
    %v1468 = vpack.c.bf16 %v1404, %v1396
    %v1469 = vpack.c.bf16 %v1405, %v1397
    %v1470 = vpack.c.bf16 %v1406, %v1398
    %v1471 = vpack.c.bf16 %v1407, %v1399
    %v1472 = vpack.c.bf16 %v1408, %v1400
    %v1473 = vpack.c.bf16 %v1409, %v1401
    %v1474 = vld [vmem:[%s3] sm:$0xf]
    %v1475 = vld [vmem:[%s3 + $0x4] sm:$0xf]
    %v1476 = vld [vmem:[%s3 + $0x8] sm:$0xf]
    %v1477 = vld [vmem:[%s3 + $0xc] sm:$0xf]
    %v1478 = vld [vmem:[%s3 + $0x10] sm:$0xf]
    %v1479 = vld [vmem:[%s3 + $0x14] sm:$0xf]
    %v1480 = vld [vmem:[%s3 + $0x18] sm:$0xf]
    %v1481 = vld [vmem:[%s3 + $0x1c] sm:$0xf]
    %v1482 = vld [vmem:[%s3 + $0x20] sm:$0xf]
    %v1483 = vld [vmem:[%s3 + $0x24] sm:$0xf]
    %v1484 = vld [vmem:[%s3 + $0x28] sm:$0xf]
    %v1485 = vld [vmem:[%s3 + $0x2c] sm:$0xf]
    %v1486 = vld [vmem:[%s3 + $0x30] sm:$0xf]
    %v1487 = vld [vmem:[%s3 + $0x34] sm:$0xf]
    %v1488 = vld [vmem:[%s3 + $0x38] sm:$0xf]
    %v1489 = vld [vmem:[%s3 + $0x3c] sm:$0xf]
    %v1490 = vld [vmem:[%s2] sm:$0xf]
    %v1491 = vld [vmem:[%s2 + $0x4] sm:$0xf]
    %v1492 = vld [vmem:[%s2 + $0x8] sm:$0xf]
    %v1493 = vld [vmem:[%s2 + $0xc] sm:$0xf]
    %v1494 = vld [vmem:[%s2 + $0x10] sm:$0xf]
    %v1495 = vld [vmem:[%s2 + $0x14] sm:$0xf]
    %v1496 = vld [vmem:[%s2 + $0x18] sm:$0xf]
    %v1497 = vld [vmem:[%s2 + $0x1c] sm:$0xf]
    %v1498 = vld [vmem:[%s2 + $0x20] sm:$0xf]
    %v1499 = vld [vmem:[%s2 + $0x24] sm:$0xf]
    %v1500 = vld [vmem:[%s2 + $0x28] sm:$0xf]
    %v1501 = vld [vmem:[%s2 + $0x2c] sm:$0xf]
    %v1502 = vld [vmem:[%s2 + $0x30] sm:$0xf]
    %v1503 = vld [vmem:[%s2 + $0x34] sm:$0xf]
    %v1504 = vld [vmem:[%s2 + $0x38] sm:$0xf]
    %v1505 = vld [vmem:[%s2 + $0x3c] sm:$0xf]
    %v1506 = vld [vmem:[%s2 + $0x40] sm:$0xf]
    %v1507 = vld [vmem:[%s2 + $0x44] sm:$0xf]
    %v1508 = vld [vmem:[%s2 + $0x48] sm:$0xf]
    %v1509 = vld [vmem:[%s2 + $0x4c] sm:$0xf]
    %v1510 = vld [vmem:[%s2 + $0x50] sm:$0xf]
    %v1511 = vld [vmem:[%s2 + $0x54] sm:$0xf]
    %v1512 = vld [vmem:[%s2 + $0x58] sm:$0xf]
    %v1513 = vld [vmem:[%s2 + $0x5c] sm:$0xf]
    %v1514 = vld [vmem:[%s2 + $0x60] sm:$0xf]
    %v1515 = vld [vmem:[%s2 + $0x64] sm:$0xf]
    %v1516 = vld [vmem:[%s2 + $0x68] sm:$0xf]
    %v1517 = vld [vmem:[%s2 + $0x6c] sm:$0xf]
    %v1518 = vld [vmem:[%s2 + $0x70] sm:$0xf]
    %v1519 = vld [vmem:[%s2 + $0x74] sm:$0xf]
    %v1520 = vld [vmem:[%s2 + $0x78] sm:$0xf]
    %v1521 = vld [vmem:[%s2 + $0x7c] sm:$0xf]
    %v1522 = vld [vmem:[%s2 + $0x80] sm:$0xf]
    %v1523 = vld [vmem:[%s2 + $0x84] sm:$0xf]
    %v1524 = vld [vmem:[%s2 + $0x88] sm:$0xf]
    %v1525 = vld [vmem:[%s2 + $0x8c] sm:$0xf]
    %v1526 = vld [vmem:[%s2 + $0x90] sm:$0xf]
    %v1527 = vld [vmem:[%s2 + $0x94] sm:$0xf]
    %v1528 = vld [vmem:[%s2 + $0x98] sm:$0xf]
    %v1529 = vld [vmem:[%s2 + $0x9c] sm:$0xf]
    %v1530 = vld [vmem:[%s2 + $0xa0] sm:$0xf]
    %v1531 = vld [vmem:[%s2 + $0xa4] sm:$0xf]
    %v1532 = vld [vmem:[%s2 + $0xa8] sm:$0xf]
    %v1533 = vld [vmem:[%s2 + $0xac] sm:$0xf]
    %v1534 = vld [vmem:[%s2 + $0xb0] sm:$0xf]
    %v1535 = vld [vmem:[%s2 + $0xb4] sm:$0xf]
    %v1536 = vld [vmem:[%s2 + $0xb8] sm:$0xf]
    %v1537 = vld [vmem:[%s2 + $0xbc] sm:$0xf]
    %v1538 = vld [vmem:[%s2 + $0xc0] sm:$0xf]
    %v1539 = vld [vmem:[%s2 + $0xc4] sm:$0xf]
    %v1540 = vld [vmem:[%s2 + $0xc8] sm:$0xf]
    %v1541 = vld [vmem:[%s2 + $0xcc] sm:$0xf]
    %v1542 = vld [vmem:[%s2 + $0xd0] sm:$0xf]
    %v1543 = vld [vmem:[%s2 + $0xd4] sm:$0xf]
    %v1544 = vld [vmem:[%s2 + $0xd8] sm:$0xf]
    %v1545 = vld [vmem:[%s2 + $0xdc] sm:$0xf]
    %v1546 = vld [vmem:[%s2 + $0xe0] sm:$0xf]
    %v1547 = vld [vmem:[%s2 + $0xe4] sm:$0xf]
    %v1548 = vld [vmem:[%s2 + $0xe8] sm:$0xf]
    %v1549 = vld [vmem:[%s2 + $0xec] sm:$0xf]
    %v1550 = vld [vmem:[%s2 + $0xf0] sm:$0xf]
    %v1551 = vld [vmem:[%s2 + $0xf4] sm:$0xf]
    %v1552 = vld [vmem:[%s2 + $0xf8] sm:$0xf]
    %v1553 = vld [vmem:[%s2 + $0xfc] sm:$0xf]
    %v1554 = vld [vmem:[%s2 + $0x100] sm:$0xf]
    %v1555 = vld [vmem:[%s2 + $0x104] sm:$0xf]
    %v1556 = vld [vmem:[%s2 + $0x108] sm:$0xf]
    %v1557 = vld [vmem:[%s2 + $0x10c] sm:$0xf]
    %v1558 = vld [vmem:[%s2 + $0x110] sm:$0xf]
    %v1559 = vld [vmem:[%s2 + $0x114] sm:$0xf]
    %v1560 = vld [vmem:[%s2 + $0x118] sm:$0xf]
    %v1561 = vld [vmem:[%s2 + $0x11c] sm:$0xf]
    %v1562 = vld [vmem:[%s2 + $0x120] sm:$0xf]
    %v1563 = vld [vmem:[%s2 + $0x124] sm:$0xf]
    %v1564 = vld [vmem:[%s2 + $0x128] sm:$0xf]
    %v1565 = vld [vmem:[%s2 + $0x12c] sm:$0xf]
    %v1566 = vld [vmem:[%s2 + $0x130] sm:$0xf]
    %v1567 = vld [vmem:[%s2 + $0x134] sm:$0xf]
    %v1568 = vld [vmem:[%s2 + $0x138] sm:$0xf]
    %v1569 = vld [vmem:[%s2 + $0x13c] sm:$0xf]
    %v1570 = vld [vmem:[%s2 + $0x140] sm:$0xf]
    %v1571 = vld [vmem:[%s2 + $0x144] sm:$0xf]
    %v1572 = vld [vmem:[%s2 + $0x148] sm:$0xf]
    %v1573 = vld [vmem:[%s2 + $0x14c] sm:$0xf]
    %v1574 = vld [vmem:[%s2 + $0x150] sm:$0xf]
    %v1575 = vld [vmem:[%s2 + $0x154] sm:$0xf]
    %v1576 = vld [vmem:[%s2 + $0x158] sm:$0xf]
    %v1577 = vld [vmem:[%s2 + $0x15c] sm:$0xf]
    %v1578 = vld [vmem:[%s2 + $0x160] sm:$0xf]
    %v1579 = vld [vmem:[%s2 + $0x164] sm:$0xf]
    %v1580 = vld [vmem:[%s2 + $0x168] sm:$0xf]
    %v1581 = vld [vmem:[%s2 + $0x16c] sm:$0xf]
    %v1582 = vld [vmem:[%s2 + $0x170] sm:$0xf]
    %v1583 = vld [vmem:[%s2 + $0x174] sm:$0xf]
    %v1584 = vld [vmem:[%s2 + $0x178] sm:$0xf]
    %v1585 = vld [vmem:[%s2 + $0x17c] sm:$0xf]
    %v1586 = vld [vmem:[%s2 + $0x180] sm:$0xf]
    %v1587 = vld [vmem:[%s2 + $0x184] sm:$0xf]
    %v1588 = vld [vmem:[%s2 + $0x188] sm:$0xf]
    %v1589 = vld [vmem:[%s2 + $0x18c] sm:$0xf]
    %v1590 = vld [vmem:[%s2 + $0x190] sm:$0xf]
    %v1591 = vld [vmem:[%s2 + $0x194] sm:$0xf]
    %v1592 = vld [vmem:[%s2 + $0x198] sm:$0xf]
    %v1593 = vld [vmem:[%s2 + $0x19c] sm:$0xf]
    %v1594 = vld [vmem:[%s2 + $0x1a0] sm:$0xf]
    %v1595 = vld [vmem:[%s2 + $0x1a4] sm:$0xf]
    %v1596 = vld [vmem:[%s2 + $0x1a8] sm:$0xf]
    %v1597 = vld [vmem:[%s2 + $0x1ac] sm:$0xf]
    %v1598 = vld [vmem:[%s2 + $0x1b0] sm:$0xf]
    %v1599 = vld [vmem:[%s2 + $0x1b4] sm:$0xf]
    %v1600 = vld [vmem:[%s2 + $0x1b8] sm:$0xf]
    %v1601 = vld [vmem:[%s2 + $0x1bc] sm:$0xf]
    %v1602 = vld [vmem:[%s2 + $0x1c0] sm:$0xf]
    %v1603 = vld [vmem:[%s2 + $0x1c4] sm:$0xf]
    %v1604 = vld [vmem:[%s2 + $0x1c8] sm:$0xf]
    %v1605 = vld [vmem:[%s2 + $0x1cc] sm:$0xf]
    %v1606 = vld [vmem:[%s2 + $0x1d0] sm:$0xf]
    %v1607 = vld [vmem:[%s2 + $0x1d4] sm:$0xf]
    %v1608 = vld [vmem:[%s2 + $0x1d8] sm:$0xf]
    %v1609 = vld [vmem:[%s2 + $0x1dc] sm:$0xf]
    %v1610 = vld [vmem:[%s2 + $0x1e0] sm:$0xf]
    %v1611 = vld [vmem:[%s2 + $0x1e4] sm:$0xf]
    %v1612 = vld [vmem:[%s2 + $0x1e8] sm:$0xf]
    %v1613 = vld [vmem:[%s2 + $0x1ec] sm:$0xf]
    %v1614 = vld [vmem:[%s2 + $0x1f0] sm:$0xf]
    %v1615 = vld [vmem:[%s2 + $0x1f4] sm:$0xf]
    %v1616 = vld [vmem:[%s2 + $0x1f8] sm:$0xf]
    %v1617 = vld [vmem:[%s2 + $0x1fc] sm:$0xf]
    %v1618 = vunpack.c.l.bf16 %v1490
    %v1619 = vunpack.c.l.bf16 %v1491
    %v1620 = vunpack.c.l.bf16 %v1492
    %v1621 = vunpack.c.l.bf16 %v1493
    %v1622 = vunpack.c.l.bf16 %v1494
    %v1623 = vunpack.c.l.bf16 %v1495
    %v1624 = vunpack.c.l.bf16 %v1496
    %v1625 = vunpack.c.l.bf16 %v1497
    %v1626 = vunpack.c.l.bf16 %v1498
    %v1627 = vunpack.c.l.bf16 %v1499
    %v1628 = vunpack.c.l.bf16 %v1500
    %v1629 = vunpack.c.l.bf16 %v1501
    %v1630 = vunpack.c.l.bf16 %v1502
    %v1631 = vunpack.c.l.bf16 %v1503
    %v1632 = vunpack.c.l.bf16 %v1504
    %v1633 = vunpack.c.l.bf16 %v1505
    %v1634 = vunpack.c.l.bf16 %v1506
    %v1635 = vunpack.c.l.bf16 %v1507
    %v1636 = vunpack.c.l.bf16 %v1508
    %v1637 = vunpack.c.l.bf16 %v1509
    %v1638 = vunpack.c.l.bf16 %v1510
    %v1639 = vunpack.c.l.bf16 %v1511
    %v1640 = vunpack.c.l.bf16 %v1512
    %v1641 = vunpack.c.l.bf16 %v1513
    %v1642 = vunpack.c.l.bf16 %v1514
    %v1643 = vunpack.c.l.bf16 %v1515
    %v1644 = vunpack.c.l.bf16 %v1516
    %v1645 = vunpack.c.l.bf16 %v1517
    %v1646 = vunpack.c.l.bf16 %v1518
    %v1647 = vunpack.c.l.bf16 %v1519
    %v1648 = vunpack.c.l.bf16 %v1520
    %v1649 = vunpack.c.l.bf16 %v1521
    %v1650 = vunpack.c.l.bf16 %v1522
    %v1651 = vunpack.c.l.bf16 %v1523
    %v1652 = vunpack.c.l.bf16 %v1524
    %v1653 = vunpack.c.l.bf16 %v1525
    %v1654 = vunpack.c.l.bf16 %v1526
    %v1655 = vunpack.c.l.bf16 %v1527
    %v1656 = vunpack.c.l.bf16 %v1528
    %v1657 = vunpack.c.l.bf16 %v1529
    %v1658 = vunpack.c.l.bf16 %v1530
    %v1659 = vunpack.c.l.bf16 %v1531
    %v1660 = vunpack.c.l.bf16 %v1532
    %v1661 = vunpack.c.l.bf16 %v1533
    %v1662 = vunpack.c.l.bf16 %v1534
    %v1663 = vunpack.c.l.bf16 %v1535
    %v1664 = vunpack.c.l.bf16 %v1536
    %v1665 = vunpack.c.l.bf16 %v1537
    %v1666 = vunpack.c.l.bf16 %v1538
    %v1667 = vunpack.c.l.bf16 %v1539
    %v1668 = vunpack.c.l.bf16 %v1540
    %v1669 = vunpack.c.l.bf16 %v1541
    %v1670 = vunpack.c.l.bf16 %v1542
    %v1671 = vunpack.c.l.bf16 %v1543
    %v1672 = vunpack.c.l.bf16 %v1544
    %v1673 = vunpack.c.l.bf16 %v1545
    %v1674 = vunpack.c.l.bf16 %v1546
    %v1675 = vunpack.c.l.bf16 %v1547
    %v1676 = vunpack.c.l.bf16 %v1548
    %v1677 = vunpack.c.l.bf16 %v1549
    %v1678 = vunpack.c.l.bf16 %v1550
    %v1679 = vunpack.c.l.bf16 %v1551
    %v1680 = vunpack.c.l.bf16 %v1552
    %v1681 = vunpack.c.l.bf16 %v1553
    %v1682 = vunpack.c.l.bf16 %v1554
    %v1683 = vunpack.c.l.bf16 %v1555
    %v1684 = vunpack.c.l.bf16 %v1556
    %v1685 = vunpack.c.l.bf16 %v1557
    %v1686 = vunpack.c.l.bf16 %v1558
    %v1687 = vunpack.c.l.bf16 %v1559
    %v1688 = vunpack.c.l.bf16 %v1560
    %v1689 = vunpack.c.l.bf16 %v1561
    %v1690 = vunpack.c.l.bf16 %v1562
    %v1691 = vunpack.c.l.bf16 %v1563
    %v1692 = vunpack.c.l.bf16 %v1564
    %v1693 = vunpack.c.l.bf16 %v1565
    %v1694 = vunpack.c.l.bf16 %v1566
    %v1695 = vunpack.c.l.bf16 %v1567
    %v1696 = vunpack.c.l.bf16 %v1568
    %v1697 = vunpack.c.l.bf16 %v1569
    %v1698 = vunpack.c.l.bf16 %v1570
    %v1699 = vunpack.c.l.bf16 %v1571
    %v1700 = vunpack.c.l.bf16 %v1572
    %v1701 = vunpack.c.l.bf16 %v1573
    %v1702 = vunpack.c.l.bf16 %v1574
    %v1703 = vunpack.c.l.bf16 %v1575
    %v1704 = vunpack.c.l.bf16 %v1576
    %v1705 = vunpack.c.l.bf16 %v1577
    %v1706 = vunpack.c.l.bf16 %v1578
    %v1707 = vunpack.c.l.bf16 %v1579
    %v1708 = vunpack.c.l.bf16 %v1580
    %v1709 = vunpack.c.l.bf16 %v1581
    %v1710 = vunpack.c.l.bf16 %v1582
    %v1711 = vunpack.c.l.bf16 %v1583
    %v1712 = vunpack.c.l.bf16 %v1584
    %v1713 = vunpack.c.l.bf16 %v1585
    %v1714 = vunpack.c.l.bf16 %v1586
    %v1715 = vunpack.c.l.bf16 %v1587
    %v1716 = vunpack.c.l.bf16 %v1588
    %v1717 = vunpack.c.l.bf16 %v1589
    %v1718 = vunpack.c.l.bf16 %v1590
    %v1719 = vunpack.c.l.bf16 %v1591
    %v1720 = vunpack.c.l.bf16 %v1592
    %v1721 = vunpack.c.l.bf16 %v1593
    %v1722 = vunpack.c.l.bf16 %v1594
    %v1723 = vunpack.c.l.bf16 %v1595
    %v1724 = vunpack.c.l.bf16 %v1596
    %v1725 = vunpack.c.l.bf16 %v1597
    %v1726 = vunpack.c.l.bf16 %v1598
    %v1727 = vunpack.c.l.bf16 %v1599
    %v1728 = vunpack.c.l.bf16 %v1600
    %v1729 = vunpack.c.l.bf16 %v1601
    %v1730 = vunpack.c.l.bf16 %v1602
    %v1731 = vunpack.c.l.bf16 %v1603
    %v1732 = vunpack.c.l.bf16 %v1604
    %v1733 = vunpack.c.l.bf16 %v1605
    %v1734 = vunpack.c.l.bf16 %v1606
    %v1735 = vunpack.c.l.bf16 %v1607
    %v1736 = vunpack.c.l.bf16 %v1608
    %v1737 = vunpack.c.l.bf16 %v1609
    %v1738 = vunpack.c.l.bf16 %v1610
    %v1739 = vunpack.c.l.bf16 %v1611
    %v1740 = vunpack.c.l.bf16 %v1612
    %v1741 = vunpack.c.l.bf16 %v1613
    %v1742 = vunpack.c.l.bf16 %v1614
    %v1743 = vunpack.c.l.bf16 %v1615
    %v1744 = vunpack.c.l.bf16 %v1616
    %v1745 = vunpack.c.l.bf16 %v1617
    %v1762 = vunpack.c.l.b16 %v1474
    %v1763 = vunpack.c.l.b16 %v1475
    %v1764 = vunpack.c.l.b16 %v1476
    %v1765 = vunpack.c.l.b16 %v1477
    %v1766 = vunpack.c.l.b16 %v1478
    %v1767 = vunpack.c.l.b16 %v1479
    %v1768 = vunpack.c.l.b16 %v1480
    %v1769 = vunpack.c.l.b16 %v1481
    %v1770 = vunpack.c.l.b16 %v1482
    %v1771 = vunpack.c.l.b16 %v1483
    %v1772 = vunpack.c.l.b16 %v1484
    %v1773 = vunpack.c.l.b16 %v1485
    %v1774 = vunpack.c.l.b16 %v1486
    %v1775 = vunpack.c.l.b16 %v1487
    %v1776 = vunpack.c.l.b16 %v1488
    %v1777 = vunpack.c.l.b16 %v1489
    %v1778 = vpack.c.b16 %v1763, %v1762
    %v1779 = vpack.c.b16 %v1765, %v1764
    %v1780 = vpack.c.b16 %v1767, %v1766
    %v1781 = vpack.c.b16 %v1769, %v1768
    %v1782 = vpack.c.b16 %v1771, %v1770
    %v1783 = vpack.c.b16 %v1773, %v1772
    %v1784 = vpack.c.b16 %v1775, %v1774
    %v1785 = vpack.c.b16 %v1777, %v1776
    %1794 = vmatpush.bf16.msra.mxu0 %v1785
    %1795 = vmatpush.bf16.msra.mxu0 %v1784
    %1796 = vmatpush.bf16.msra.mxu0 %v1783
    %1797 = vmatpush.bf16.msra.mxu0 %v1782
    %1798 = vmatpush.bf16.msra.mxu0 %v1781
    %1799 = vmatpush.bf16.msra.mxu0 %v1780
    %1800 = vmatpush.bf16.msra.mxu0 %v1779
    %1801 = vmatpush.bf16.msra.mxu0 %v1778
    %1802 = vmatmul.bf16.gmra.mxu0 %v936
    %v1803 = vpop.f32.mrf.mxu0
    %v1804 = vadd.f32 %v1618, %v1803
    %v1805 = vpop.f32.mrf.mxu0
    %v1806 = vadd.f32 %v1619, %v1805
    %1807 = vmatmul.bf16.gmra.mxu0 %v937
    %v1808 = vpop.f32.mrf.mxu0
    %v1809 = vadd.f32 %v1620, %v1808
    %v1810 = vpop.f32.mrf.mxu0
    %v1811 = vadd.f32 %v1621, %v1810
    %1812 = vmatmul.bf16.gmra.mxu0 %v938
    %v1813 = vpop.f32.mrf.mxu0
    %v1814 = vadd.f32 %v1622, %v1813
    %v1815 = vpop.f32.mrf.mxu0
    %v1816 = vadd.f32 %v1623, %v1815
    %1817 = vmatmul.bf16.gmra.mxu0 %v939
    %v1818 = vpop.f32.mrf.mxu0
    %v1819 = vadd.f32 %v1624, %v1818
    %v1820 = vpop.f32.mrf.mxu0
    %v1821 = vadd.f32 %v1625, %v1820
    %1822 = vmatmul.bf16.gmra.mxu0 %v940
    %v1823 = vpop.f32.mrf.mxu0
    %v1824 = vadd.f32 %v1626, %v1823
    %v1825 = vpop.f32.mrf.mxu0
    %v1826 = vadd.f32 %v1627, %v1825
    %1827 = vmatmul.bf16.gmra.mxu0 %v941
    %v1828 = vpop.f32.mrf.mxu0
    %v1829 = vadd.f32 %v1628, %v1828
    %v1830 = vpop.f32.mrf.mxu0
    %v1831 = vadd.f32 %v1629, %v1830
    %1832 = vmatmul.bf16.gmra.mxu0 %v942
    %v1833 = vpop.f32.mrf.mxu0
    %v1834 = vadd.f32 %v1630, %v1833
    %v1835 = vpop.f32.mrf.mxu0
    %v1836 = vadd.f32 %v1631, %v1835
    %1837 = vmatmul.bf16.gmra.mxu0 %v943
    %v1838 = vpop.f32.mrf.mxu0
    %v1839 = vadd.f32 %v1632, %v1838
    %v1840 = vpop.f32.mrf.mxu0
    %v1841 = vadd.f32 %v1633, %v1840
    %1842 = vmatmul.bf16.gmra.mxu0 %v944
    %v1843 = vpop.f32.mrf.mxu0
    %v1844 = vadd.f32 %v1634, %v1843
    %v1845 = vpop.f32.mrf.mxu0
    %v1846 = vadd.f32 %v1635, %v1845
    %1847 = vmatmul.bf16.gmra.mxu0 %v945
    %v1848 = vpop.f32.mrf.mxu0
    %v1849 = vadd.f32 %v1636, %v1848
    %v1850 = vpop.f32.mrf.mxu0
    %v1851 = vadd.f32 %v1637, %v1850
    %1852 = vmatmul.bf16.gmra.mxu0 %v946
    %v1853 = vpop.f32.mrf.mxu0
    %v1854 = vadd.f32 %v1638, %v1853
    %v1855 = vpop.f32.mrf.mxu0
    %v1856 = vadd.f32 %v1639, %v1855
    %1857 = vmatmul.bf16.gmra.mxu0 %v947
    %v1858 = vpop.f32.mrf.mxu0
    %v1859 = vadd.f32 %v1640, %v1858
    %v1860 = vpop.f32.mrf.mxu0
    %v1861 = vadd.f32 %v1641, %v1860
    %1862 = vmatmul.bf16.gmra.mxu0 %v948
    %v1863 = vpop.f32.mrf.mxu0
    %v1864 = vadd.f32 %v1642, %v1863
    %v1865 = vpop.f32.mrf.mxu0
    %v1866 = vadd.f32 %v1643, %v1865
    %1867 = vmatmul.bf16.gmra.mxu0 %v949
    %v1868 = vpop.f32.mrf.mxu0
    %v1869 = vadd.f32 %v1644, %v1868
    %v1870 = vpop.f32.mrf.mxu0
    %v1871 = vadd.f32 %v1645, %v1870
    %1872 = vmatmul.bf16.gmra.mxu0 %v950
    %v1873 = vpop.f32.mrf.mxu0
    %v1874 = vadd.f32 %v1646, %v1873
    %v1875 = vpop.f32.mrf.mxu0
    %v1876 = vadd.f32 %v1647, %v1875
    %1877 = vmatmul.bf16.gmra.mxu0 %v951
    %v1878 = vpop.f32.mrf.mxu0
    %v1879 = vadd.f32 %v1648, %v1878
    %v1880 = vpop.f32.mrf.mxu0
    %v1881 = vadd.f32 %v1649, %v1880
    %1882 = vmatmul.bf16.gmra.mxu0 %v952
    %v1883 = vpop.f32.mrf.mxu0
    %v1884 = vadd.f32 %v1650, %v1883
    %v1885 = vpop.f32.mrf.mxu0
    %v1886 = vadd.f32 %v1651, %v1885
    %1887 = vmatmul.bf16.gmra.mxu0 %v953
    %v1888 = vpop.f32.mrf.mxu0
    %v1889 = vadd.f32 %v1652, %v1888
    %v1890 = vpop.f32.mrf.mxu0
    %v1891 = vadd.f32 %v1653, %v1890
    %1892 = vmatmul.bf16.gmra.mxu0 %v954
    %v1893 = vpop.f32.mrf.mxu0
    %v1894 = vadd.f32 %v1654, %v1893
    %v1895 = vpop.f32.mrf.mxu0
    %v1896 = vadd.f32 %v1655, %v1895
    %1897 = vmatmul.bf16.gmra.mxu0 %v955
    %v1898 = vpop.f32.mrf.mxu0
    %v1899 = vadd.f32 %v1656, %v1898
    %v1900 = vpop.f32.mrf.mxu0
    %v1901 = vadd.f32 %v1657, %v1900
    %1902 = vmatmul.bf16.gmra.mxu0 %v956
    %v1903 = vpop.f32.mrf.mxu0
    %v1904 = vadd.f32 %v1658, %v1903
    %v1905 = vpop.f32.mrf.mxu0
    %v1906 = vadd.f32 %v1659, %v1905
    %1907 = vmatmul.bf16.gmra.mxu0 %v957
    %v1908 = vpop.f32.mrf.mxu0
    %v1909 = vadd.f32 %v1660, %v1908
    %v1910 = vpop.f32.mrf.mxu0
    %v1911 = vadd.f32 %v1661, %v1910
    %1912 = vmatmul.bf16.gmra.mxu0 %v958
    %v1913 = vpop.f32.mrf.mxu0
    %v1914 = vadd.f32 %v1662, %v1913
    %v1915 = vpop.f32.mrf.mxu0
    %v1916 = vadd.f32 %v1663, %v1915
    %1917 = vmatmul.bf16.gmra.mxu0 %v959
    %v1918 = vpop.f32.mrf.mxu0
    %v1919 = vadd.f32 %v1664, %v1918
    %v1920 = vpop.f32.mrf.mxu0
    %v1921 = vadd.f32 %v1665, %v1920
    %1922 = vmatmul.bf16.gmra.mxu0 %v960
    %v1923 = vpop.f32.mrf.mxu0
    %v1924 = vadd.f32 %v1666, %v1923
    %v1925 = vpop.f32.mrf.mxu0
    %v1926 = vadd.f32 %v1667, %v1925
    %1927 = vmatmul.bf16.gmra.mxu0 %v961
    %v1928 = vpop.f32.mrf.mxu0
    %v1929 = vadd.f32 %v1668, %v1928
    %v1930 = vpop.f32.mrf.mxu0
    %v1931 = vadd.f32 %v1669, %v1930
    %1932 = vmatmul.bf16.gmra.mxu0 %v962
    %v1933 = vpop.f32.mrf.mxu0
    %v1934 = vadd.f32 %v1670, %v1933
    %v1935 = vpop.f32.mrf.mxu0
    %v1936 = vadd.f32 %v1671, %v1935
    %1937 = vmatmul.bf16.gmra.mxu0 %v963
    %v1938 = vpop.f32.mrf.mxu0
    %v1939 = vadd.f32 %v1672, %v1938
    %v1940 = vpop.f32.mrf.mxu0
    %v1941 = vadd.f32 %v1673, %v1940
    %1942 = vmatmul.bf16.gmra.mxu0 %v964
    %v1943 = vpop.f32.mrf.mxu0
    %v1944 = vadd.f32 %v1674, %v1943
    %v1945 = vpop.f32.mrf.mxu0
    %v1946 = vadd.f32 %v1675, %v1945
    %1947 = vmatmul.bf16.gmra.mxu0 %v965
    %v1948 = vpop.f32.mrf.mxu0
    %v1949 = vadd.f32 %v1676, %v1948
    %v1950 = vpop.f32.mrf.mxu0
    %v1951 = vadd.f32 %v1677, %v1950
    %1952 = vmatmul.bf16.gmra.mxu0 %v966
    %v1953 = vpop.f32.mrf.mxu0
    %v1954 = vadd.f32 %v1678, %v1953
    %v1955 = vpop.f32.mrf.mxu0
    %v1956 = vadd.f32 %v1679, %v1955
    %1957 = vmatmul.bf16.gmra.mxu0 %v967
    %v1958 = vpop.f32.mrf.mxu0
    %v1959 = vadd.f32 %v1680, %v1958
    %v1960 = vpop.f32.mrf.mxu0
    %v1961 = vadd.f32 %v1681, %v1960
    %1962 = vmatmul.bf16.gmra.mxu0 %v968
    %v1963 = vpop.f32.mrf.mxu0
    %v1964 = vadd.f32 %v1682, %v1963
    %v1965 = vpop.f32.mrf.mxu0
    %v1966 = vadd.f32 %v1683, %v1965
    %1967 = vmatmul.bf16.gmra.mxu0 %v969
    %v1968 = vpop.f32.mrf.mxu0
    %v1969 = vadd.f32 %v1684, %v1968
    %v1970 = vpop.f32.mrf.mxu0
    %v1971 = vadd.f32 %v1685, %v1970
    %1972 = vmatmul.bf16.gmra.mxu0 %v970
    %v1973 = vpop.f32.mrf.mxu0
    %v1974 = vadd.f32 %v1686, %v1973
    %v1975 = vpop.f32.mrf.mxu0
    %v1976 = vadd.f32 %v1687, %v1975
    %1977 = vmatmul.bf16.gmra.mxu0 %v971
    %v1978 = vpop.f32.mrf.mxu0
    %v1979 = vadd.f32 %v1688, %v1978
    %v1980 = vpop.f32.mrf.mxu0
    %v1981 = vadd.f32 %v1689, %v1980
    %1982 = vmatmul.bf16.gmra.mxu0 %v972
    %v1983 = vpop.f32.mrf.mxu0
    %v1984 = vadd.f32 %v1690, %v1983
    %v1985 = vpop.f32.mrf.mxu0
    %v1986 = vadd.f32 %v1691, %v1985
    %1987 = vmatmul.bf16.gmra.mxu0 %v973
    %v1988 = vpop.f32.mrf.mxu0
    %v1989 = vadd.f32 %v1692, %v1988
    %v1990 = vpop.f32.mrf.mxu0
    %v1991 = vadd.f32 %v1693, %v1990
    %1992 = vmatmul.bf16.gmra.mxu0 %v974
    %v1993 = vpop.f32.mrf.mxu0
    %v1994 = vadd.f32 %v1694, %v1993
    %v1995 = vpop.f32.mrf.mxu0
    %v1996 = vadd.f32 %v1695, %v1995
    %1997 = vmatmul.bf16.gmra.mxu0 %v975
    %v1998 = vpop.f32.mrf.mxu0
    %v1999 = vadd.f32 %v1696, %v1998
    %v2000 = vpop.f32.mrf.mxu0
    %v2001 = vadd.f32 %v1697, %v2000
    %2002 = vmatmul.bf16.gmra.mxu0 %v976
    %v2003 = vpop.f32.mrf.mxu0
    %v2004 = vadd.f32 %v1698, %v2003
    %v2005 = vpop.f32.mrf.mxu0
    %v2006 = vadd.f32 %v1699, %v2005
    %2007 = vmatmul.bf16.gmra.mxu0 %v977
    %v2008 = vpop.f32.mrf.mxu0
    %v2009 = vadd.f32 %v1700, %v2008
    %v2010 = vpop.f32.mrf.mxu0
    %v2011 = vadd.f32 %v1701, %v2010
    %2012 = vmatmul.bf16.gmra.mxu0 %v978
    %v2013 = vpop.f32.mrf.mxu0
    %v2014 = vadd.f32 %v1702, %v2013
    %v2015 = vpop.f32.mrf.mxu0
    %v2016 = vadd.f32 %v1703, %v2015
    %2017 = vmatmul.bf16.gmra.mxu0 %v979
    %v2018 = vpop.f32.mrf.mxu0
    %v2019 = vadd.f32 %v1704, %v2018
    %v2020 = vpop.f32.mrf.mxu0
    %v2021 = vadd.f32 %v1705, %v2020
    %2022 = vmatmul.bf16.gmra.mxu0 %v980
    %v2023 = vpop.f32.mrf.mxu0
    %v2024 = vadd.f32 %v1706, %v2023
    %v2025 = vpop.f32.mrf.mxu0
    %v2026 = vadd.f32 %v1707, %v2025
    %2027 = vmatmul.bf16.gmra.mxu0 %v981
    %v2028 = vpop.f32.mrf.mxu0
    %v2029 = vadd.f32 %v1708, %v2028
    %v2030 = vpop.f32.mrf.mxu0
    %v2031 = vadd.f32 %v1709, %v2030
    %2032 = vmatmul.bf16.gmra.mxu0 %v982
    %v2033 = vpop.f32.mrf.mxu0
    %v2034 = vadd.f32 %v1710, %v2033
    %v2035 = vpop.f32.mrf.mxu0
    %v2036 = vadd.f32 %v1711, %v2035
    %2037 = vmatmul.bf16.gmra.mxu0 %v983
    %v2038 = vpop.f32.mrf.mxu0
    %v2039 = vadd.f32 %v1712, %v2038
    %v2040 = vpop.f32.mrf.mxu0
    %v2041 = vadd.f32 %v1713, %v2040
    %2042 = vmatmul.bf16.gmra.mxu0 %v984
    %v2043 = vpop.f32.mrf.mxu0
    %v2044 = vadd.f32 %v1714, %v2043
    %v2045 = vpop.f32.mrf.mxu0
    %v2046 = vadd.f32 %v1715, %v2045
    %2047 = vmatmul.bf16.gmra.mxu0 %v985
    %v2048 = vpop.f32.mrf.mxu0
    %v2049 = vadd.f32 %v1716, %v2048
    %v2050 = vpop.f32.mrf.mxu0
    %v2051 = vadd.f32 %v1717, %v2050
    %2052 = vmatmul.bf16.gmra.mxu0 %v986
    %v2053 = vpop.f32.mrf.mxu0
    %v2054 = vadd.f32 %v1718, %v2053
    %v2055 = vpop.f32.mrf.mxu0
    %v2056 = vadd.f32 %v1719, %v2055
    %2057 = vmatmul.bf16.gmra.mxu0 %v987
    %v2058 = vpop.f32.mrf.mxu0
    %v2059 = vadd.f32 %v1720, %v2058
    %v2060 = vpop.f32.mrf.mxu0
    %v2061 = vadd.f32 %v1721, %v2060
    %2062 = vmatmul.bf16.gmra.mxu0 %v988
    %v2063 = vpop.f32.mrf.mxu0
    %v2064 = vadd.f32 %v1722, %v2063
    %v2065 = vpop.f32.mrf.mxu0
    %v2066 = vadd.f32 %v1723, %v2065
    %2067 = vmatmul.bf16.gmra.mxu0 %v989
    %v2068 = vpop.f32.mrf.mxu0
    %v2069 = vadd.f32 %v1724, %v2068
    %v2070 = vpop.f32.mrf.mxu0
    %v2071 = vadd.f32 %v1725, %v2070
    %2072 = vmatmul.bf16.gmra.mxu0 %v990
    %v2073 = vpop.f32.mrf.mxu0
    %v2074 = vadd.f32 %v1726, %v2073
    %v2075 = vpop.f32.mrf.mxu0
    %v2076 = vadd.f32 %v1727, %v2075
    %2077 = vmatmul.bf16.gmra.mxu0 %v991
    %v2078 = vpop.f32.mrf.mxu0
    %v2079 = vadd.f32 %v1728, %v2078
    %v2080 = vpop.f32.mrf.mxu0
    %v2081 = vadd.f32 %v1729, %v2080
    %2082 = vmatmul.bf16.gmra.mxu0 %v992
    %v2083 = vpop.f32.mrf.mxu0
    %v2084 = vadd.f32 %v1730, %v2083
    %v2085 = vpop.f32.mrf.mxu0
    %v2086 = vadd.f32 %v1731, %v2085
    %2087 = vmatmul.bf16.gmra.mxu0 %v993
    %v2088 = vpop.f32.mrf.mxu0
    %v2089 = vadd.f32 %v1732, %v2088
    %v2090 = vpop.f32.mrf.mxu0
    %v2091 = vadd.f32 %v1733, %v2090
    %2092 = vmatmul.bf16.gmra.mxu0 %v994
    %v2093 = vpop.f32.mrf.mxu0
    %v2094 = vadd.f32 %v1734, %v2093
    %v2095 = vpop.f32.mrf.mxu0
    %v2096 = vadd.f32 %v1735, %v2095
    %2097 = vmatmul.bf16.gmra.mxu0 %v995
    %v2098 = vpop.f32.mrf.mxu0
    %v2099 = vadd.f32 %v1736, %v2098
    %v2100 = vpop.f32.mrf.mxu0
    %v2101 = vadd.f32 %v1737, %v2100
    %2102 = vmatmul.bf16.gmra.mxu0 %v996
    %v2103 = vpop.f32.mrf.mxu0
    %v2104 = vadd.f32 %v1738, %v2103
    %v2105 = vpop.f32.mrf.mxu0
    %v2106 = vadd.f32 %v1739, %v2105
    %2107 = vmatmul.bf16.gmra.mxu0 %v997
    %v2108 = vpop.f32.mrf.mxu0
    %v2109 = vadd.f32 %v1740, %v2108
    %v2110 = vpop.f32.mrf.mxu0
    %v2111 = vadd.f32 %v1741, %v2110
    %2112 = vmatmul.bf16.gmra.mxu0 %v998
    %v2113 = vpop.f32.mrf.mxu0
    %v2114 = vadd.f32 %v1742, %v2113
    %v2115 = vpop.f32.mrf.mxu0
    %v2116 = vadd.f32 %v1743, %v2115
    %2117 = vmatmul.bf16.gmra.mxu0 %v999
    %v2118 = vpop.f32.mrf.mxu0
    %v2119 = vadd.f32 %v1744, %v2118
    %v2120 = vpop.f32.mrf.mxu0
    %v2121 = vadd.f32 %v1745, %v2120
    %2122 = vdwg.mxu0
    %v2123 = vld [vmem:[#allocation2] sm:$0xff]
    %v2124 = vld [vmem:[#allocation2 + $0x8] sm:$0xff]
    %v2125 = vld [vmem:[#allocation2 + $0x10] sm:$0xff]
    %v2126 = vld [vmem:[#allocation2 + $0x18] sm:$0xff]
    %v2127 = vld [vmem:[#allocation2 + $0x20] sm:$0xff]
    %v2128 = vld [vmem:[#allocation2 + $0x28] sm:$0xff]
    %v2129 = vld [vmem:[#allocation2 + $0x30] sm:$0xff]
    %v2130 = vld [vmem:[#allocation2 + $0x38] sm:$0xff]
    %v2131 = vld [vmem:[#allocation2 + $0x40] sm:$0xff]
    %v2132 = vld [vmem:[#allocation2 + $0x48] sm:$0xff]
    %v2133 = vld [vmem:[#allocation2 + $0x50] sm:$0xff]
    %v2134 = vld [vmem:[#allocation2 + $0x58] sm:$0xff]
    %v2135 = vld [vmem:[#allocation2 + $0x60] sm:$0xff]
    %v2136 = vld [vmem:[#allocation2 + $0x68] sm:$0xff]
    %v2137 = vld [vmem:[#allocation2 + $0x70] sm:$0xff]
    %v2138 = vld [vmem:[#allocation2 + $0x78] sm:$0xff]
    %v2139 = vpack.c.bf16 %v1806, %v1804
    %v2140 = vpack.c.bf16 %v1811, %v1809
    %v2141 = vpack.c.bf16 %v1816, %v1814
    %v2142 = vpack.c.bf16 %v1821, %v1819
    %v2143 = vpack.c.bf16 %v1826, %v1824
    %v2144 = vpack.c.bf16 %v1831, %v1829
    %v2145 = vpack.c.bf16 %v1836, %v1834
    %v2146 = vpack.c.bf16 %v1841, %v1839
    %v2147 = vpack.c.bf16 %v1846, %v1844
    %v2148 = vpack.c.bf16 %v1851, %v1849
    %v2149 = vpack.c.bf16 %v1856, %v1854
    %v2150 = vpack.c.bf16 %v1861, %v1859
    %v2151 = vpack.c.bf16 %v1866, %v1864
    %v2152 = vpack.c.bf16 %v1871, %v1869
    %v2153 = vpack.c.bf16 %v1876, %v1874
    %v2154 = vpack.c.bf16 %v1881, %v1879
    %v2155 = vpack.c.bf16 %v1886, %v1884
    %v2156 = vpack.c.bf16 %v1891, %v1889
    %v2157 = vpack.c.bf16 %v1896, %v1894
    %v2158 = vpack.c.bf16 %v1901, %v1899
    %v2159 = vpack.c.bf16 %v1906, %v1904
    %v2160 = vpack.c.bf16 %v1911, %v1909
    %v2161 = vpack.c.bf16 %v1916, %v1914
    %v2162 = vpack.c.bf16 %v1921, %v1919
    %v2163 = vpack.c.bf16 %v1926, %v1924
    %v2164 = vpack.c.bf16 %v1931, %v1929
    %v2165 = vpack.c.bf16 %v1936, %v1934
    %v2166 = vpack.c.bf16 %v1941, %v1939
    %v2167 = vpack.c.bf16 %v1946, %v1944
    %v2168 = vpack.c.bf16 %v1951, %v1949
    %v2169 = vpack.c.bf16 %v1956, %v1954
    %v2170 = vpack.c.bf16 %v1961, %v1959
    %v2171 = vpack.c.bf16 %v1966, %v1964
    %v2172 = vpack.c.bf16 %v1971, %v1969
    %v2173 = vpack.c.bf16 %v1976, %v1974
    %v2174 = vpack.c.bf16 %v1981, %v1979
    %v2175 = vpack.c.bf16 %v1986, %v1984
    %v2176 = vpack.c.bf16 %v1991, %v1989
    %v2177 = vpack.c.bf16 %v1996, %v1994
    %v2178 = vpack.c.bf16 %v2001, %v1999
    %v2179 = vpack.c.bf16 %v2006, %v2004
    %v2180 = vpack.c.bf16 %v2011, %v2009
    %v2181 = vpack.c.bf16 %v2016, %v2014
    %v2182 = vpack.c.bf16 %v2021, %v2019
    %v2183 = vpack.c.bf16 %v2026, %v2024
    %v2184 = vpack.c.bf16 %v2031, %v2029
    %v2185 = vpack.c.bf16 %v2036, %v2034
    %v2186 = vpack.c.bf16 %v2041, %v2039
    %v2187 = vpack.c.bf16 %v2046, %v2044
    %v2188 = vpack.c.bf16 %v2051, %v2049
    %v2189 = vpack.c.bf16 %v2056, %v2054
    %v2190 = vpack.c.bf16 %v2061, %v2059
    %v2191 = vpack.c.bf16 %v2066, %v2064
    %v2192 = vpack.c.bf16 %v2071, %v2069
    %v2193 = vpack.c.bf16 %v2076, %v2074
    %v2194 = vpack.c.bf16 %v2081, %v2079
    %v2195 = vpack.c.bf16 %v2086, %v2084
    %v2196 = vpack.c.bf16 %v2091, %v2089
    %v2197 = vpack.c.bf16 %v2096, %v2094
    %v2198 = vpack.c.bf16 %v2101, %v2099
    %v2199 = vpack.c.bf16 %v2106, %v2104
    %v2200 = vpack.c.bf16 %v2111, %v2109
    %v2201 = vpack.c.bf16 %v2116, %v2114
    %v2202 = vpack.c.bf16 %v2121, %v2119
    %2203 = vmatpush.bf16.msra.mxu0 %v2146
    %2204 = vmatpush.bf16.msra.mxu0 %v2145
    %2205 = vmatpush.bf16.msra.mxu0 %v2144
    %2206 = vmatpush.bf16.msra.mxu0 %v2143
    %2207 = vmatpush.bf16.msra.mxu0 %v2142
    %2208 = vmatpush.bf16.msra.mxu0 %v2141
    %2209 = vmatpush.bf16.msra.mxu0 %v2140
    %2210 = vmatpush.bf16.msra.mxu0 %v2139
    %2211 = vmatmul.bf16.gmra.mxu0 %v1410
    %v2212 = vpop.f32.mrf.mxu0
    %v2213 = vadd.f32 0.0, %v2212
    %v2214 = vpop.f32.mrf.mxu0
    %v2215 = vadd.f32 0.0, %v2214
    %2216 = vmatmul.bf16.gmra.mxu0 %v1418
    %v2217 = vpop.f32.mrf.mxu0
    %v2218 = vadd.f32 0.0, %v2217
    %v2219 = vpop.f32.mrf.mxu0
    %v2220 = vadd.f32 0.0, %v2219
    %2221 = vmatmul.bf16.gmra.mxu0 %v1426
    %v2222 = vpop.f32.mrf.mxu0
    %v2223 = vadd.f32 0.0, %v2222
    %v2224 = vpop.f32.mrf.mxu0
    %v2225 = vadd.f32 0.0, %v2224
    %2226 = vmatmul.bf16.gmra.mxu0 %v1434
    %v2227 = vpop.f32.mrf.mxu0
    %v2228 = vadd.f32 0.0, %v2227
    %v2229 = vpop.f32.mrf.mxu0
    %v2230 = vadd.f32 0.0, %v2229
    %2231 = vmatmul.bf16.gmra.mxu0 %v1442
    %v2232 = vpop.f32.mrf.mxu0
    %v2233 = vadd.f32 0.0, %v2232
    %v2234 = vpop.f32.mrf.mxu0
    %v2235 = vadd.f32 0.0, %v2234
    %2236 = vmatmul.bf16.gmra.mxu0 %v1450
    %v2237 = vpop.f32.mrf.mxu0
    %v2238 = vadd.f32 0.0, %v2237
    %v2239 = vpop.f32.mrf.mxu0
    %v2240 = vadd.f32 0.0, %v2239
    %2241 = vmatmul.bf16.gmra.mxu0 %v1458
    %v2242 = vpop.f32.mrf.mxu0
    %v2243 = vadd.f32 0.0, %v2242
    %v2244 = vpop.f32.mrf.mxu0
    %v2245 = vadd.f32 0.0, %v2244
    %2246 = vmatmul.bf16.gmra.mxu0 %v1466
    %v2247 = vpop.f32.mrf.mxu0
    %v2248 = vadd.f32 0.0, %v2247
    %v2249 = vpop.f32.mrf.mxu0
    %v2250 = vadd.f32 0.0, %v2249
    %2251 = vdwg.mxu0
    %2252 = vmatpush.bf16.msra.mxu0 %v2154
    %2253 = vmatpush.bf16.msra.mxu0 %v2153
    %2254 = vmatpush.bf16.msra.mxu0 %v2152
    %2255 = vmatpush.bf16.msra.mxu0 %v2151
    %2256 = vmatpush.bf16.msra.mxu0 %v2150
    %2257 = vmatpush.bf16.msra.mxu0 %v2149
    %2258 = vmatpush.bf16.msra.mxu0 %v2148
    %2259 = vmatpush.bf16.msra.mxu0 %v2147
    %2260 = vmatmul.bf16.gmra.mxu0 %v1411
    %v2261 = vpop.f32.mrf.mxu0
    %v2262 = vadd.f32 %v2213, %v2261
    %v2263 = vpop.f32.mrf.mxu0
    %v2264 = vadd.f32 %v2215, %v2263
    %2265 = vmatmul.bf16.gmra.mxu0 %v1419
    %v2266 = vpop.f32.mrf.mxu0
    %v2267 = vadd.f32 %v2218, %v2266
    %v2268 = vpop.f32.mrf.mxu0
    %v2269 = vadd.f32 %v2220, %v2268
    %2270 = vmatmul.bf16.gmra.mxu0 %v1427
    %v2271 = vpop.f32.mrf.mxu0
    %v2272 = vadd.f32 %v2223, %v2271
    %v2273 = vpop.f32.mrf.mxu0
    %v2274 = vadd.f32 %v2225, %v2273
    %2275 = vmatmul.bf16.gmra.mxu0 %v1435
    %v2276 = vpop.f32.mrf.mxu0
    %v2277 = vadd.f32 %v2228, %v2276
    %v2278 = vpop.f32.mrf.mxu0
    %v2279 = vadd.f32 %v2230, %v2278
    %2280 = vmatmul.bf16.gmra.mxu0 %v1443
    %v2281 = vpop.f32.mrf.mxu0
    %v2282 = vadd.f32 %v2233, %v2281
    %v2283 = vpop.f32.mrf.mxu0
    %v2284 = vadd.f32 %v2235, %v2283
    %2285 = vmatmul.bf16.gmra.mxu0 %v1451
    %v2286 = vpop.f32.mrf.mxu0
    %v2287 = vadd.f32 %v2238, %v2286
    %v2288 = vpop.f32.mrf.mxu0
    %v2289 = vadd.f32 %v2240, %v2288
    %2290 = vmatmul.bf16.gmra.mxu0 %v1459
    %v2291 = vpop.f32.mrf.mxu0
    %v2292 = vadd.f32 %v2243, %v2291
    %v2293 = vpop.f32.mrf.mxu0
    %v2294 = vadd.f32 %v2245, %v2293
    %2295 = vmatmul.bf16.gmra.mxu0 %v1467
    %v2296 = vpop.f32.mrf.mxu0
    %v2297 = vadd.f32 %v2248, %v2296
    %v2298 = vpop.f32.mrf.mxu0
    %v2299 = vadd.f32 %v2250, %v2298
    %2300 = vdwg.mxu0
    %2301 = vmatpush.bf16.msra.mxu0 %v2162
    %2302 = vmatpush.bf16.msra.mxu0 %v2161
    %2303 = vmatpush.bf16.msra.mxu0 %v2160
    %2304 = vmatpush.bf16.msra.mxu0 %v2159
    %2305 = vmatpush.bf16.msra.mxu0 %v2158
    %2306 = vmatpush.bf16.msra.mxu0 %v2157
    %2307 = vmatpush.bf16.msra.mxu0 %v2156
    %2308 = vmatpush.bf16.msra.mxu0 %v2155
    %2309 = vmatmul.bf16.gmra.mxu0 %v1412
    %v2310 = vpop.f32.mrf.mxu0
    %v2311 = vadd.f32 %v2262, %v2310
    %v2312 = vpop.f32.mrf.mxu0
    %v2313 = vadd.f32 %v2264, %v2312
    %2314 = vmatmul.bf16.gmra.mxu0 %v1420
    %v2315 = vpop.f32.mrf.mxu0
    %v2316 = vadd.f32 %v2267, %v2315
    %v2317 = vpop.f32.mrf.mxu0
    %v2318 = vadd.f32 %v2269, %v2317
    %2319 = vmatmul.bf16.gmra.mxu0 %v1428
    %v2320 = vpop.f32.mrf.mxu0
    %v2321 = vadd.f32 %v2272, %v2320
    %v2322 = vpop.f32.mrf.mxu0
    %v2323 = vadd.f32 %v2274, %v2322
    %2324 = vmatmul.bf16.gmra.mxu0 %v1436
    %v2325 = vpop.f32.mrf.mxu0
    %v2326 = vadd.f32 %v2277, %v2325
    %v2327 = vpop.f32.mrf.mxu0
    %v2328 = vadd.f32 %v2279, %v2327
    %2329 = vmatmul.bf16.gmra.mxu0 %v1444
    %v2330 = vpop.f32.mrf.mxu0
    %v2331 = vadd.f32 %v2282, %v2330
    %v2332 = vpop.f32.mrf.mxu0
    %v2333 = vadd.f32 %v2284, %v2332
    %2334 = vmatmul.bf16.gmra.mxu0 %v1452
    %v2335 = vpop.f32.mrf.mxu0
    %v2336 = vadd.f32 %v2287, %v2335
    %v2337 = vpop.f32.mrf.mxu0
    %v2338 = vadd.f32 %v2289, %v2337
    %2339 = vmatmul.bf16.gmra.mxu0 %v1460
    %v2340 = vpop.f32.mrf.mxu0
    %v2341 = vadd.f32 %v2292, %v2340
    %v2342 = vpop.f32.mrf.mxu0
    %v2343 = vadd.f32 %v2294, %v2342
    %2344 = vmatmul.bf16.gmra.mxu0 %v1468
    %v2345 = vpop.f32.mrf.mxu0
    %v2346 = vadd.f32 %v2297, %v2345
    %v2347 = vpop.f32.mrf.mxu0
    %v2348 = vadd.f32 %v2299, %v2347
    %2349 = vdwg.mxu0
    %2350 = vmatpush.bf16.msra.mxu0 %v2170
    %2351 = vmatpush.bf16.msra.mxu0 %v2169
    %2352 = vmatpush.bf16.msra.mxu0 %v2168
    %2353 = vmatpush.bf16.msra.mxu0 %v2167
    %2354 = vmatpush.bf16.msra.mxu0 %v2166
    %2355 = vmatpush.bf16.msra.mxu0 %v2165
    %2356 = vmatpush.bf16.msra.mxu0 %v2164
    %2357 = vmatpush.bf16.msra.mxu0 %v2163
    %2358 = vmatmul.bf16.gmra.mxu0 %v1413
    %v2359 = vpop.f32.mrf.mxu0
    %v2360 = vadd.f32 %v2311, %v2359
    %v2361 = vpop.f32.mrf.mxu0
    %v2362 = vadd.f32 %v2313, %v2361
    %2363 = vmatmul.bf16.gmra.mxu0 %v1421
    %v2364 = vpop.f32.mrf.mxu0
    %v2365 = vadd.f32 %v2316, %v2364
    %v2366 = vpop.f32.mrf.mxu0
    %v2367 = vadd.f32 %v2318, %v2366
    %2368 = vmatmul.bf16.gmra.mxu0 %v1429
    %v2369 = vpop.f32.mrf.mxu0
    %v2370 = vadd.f32 %v2321, %v2369
    %v2371 = vpop.f32.mrf.mxu0
    %v2372 = vadd.f32 %v2323, %v2371
    %2373 = vmatmul.bf16.gmra.mxu0 %v1437
    %v2374 = vpop.f32.mrf.mxu0
    %v2375 = vadd.f32 %v2326, %v2374
    %v2376 = vpop.f32.mrf.mxu0
    %v2377 = vadd.f32 %v2328, %v2376
    %2378 = vmatmul.bf16.gmra.mxu0 %v1445
    %v2379 = vpop.f32.mrf.mxu0
    %v2380 = vadd.f32 %v2331, %v2379
    %v2381 = vpop.f32.mrf.mxu0
    %v2382 = vadd.f32 %v2333, %v2381
    %2383 = vmatmul.bf16.gmra.mxu0 %v1453
    %v2384 = vpop.f32.mrf.mxu0
    %v2385 = vadd.f32 %v2336, %v2384
    %v2386 = vpop.f32.mrf.mxu0
    %v2387 = vadd.f32 %v2338, %v2386
    %2388 = vmatmul.bf16.gmra.mxu0 %v1461
    %v2389 = vpop.f32.mrf.mxu0
    %v2390 = vadd.f32 %v2341, %v2389
    %v2391 = vpop.f32.mrf.mxu0
    %v2392 = vadd.f32 %v2343, %v2391
    %2393 = vmatmul.bf16.gmra.mxu0 %v1469
    %v2394 = vpop.f32.mrf.mxu0
    %v2395 = vadd.f32 %v2346, %v2394
    %v2396 = vpop.f32.mrf.mxu0
    %v2397 = vadd.f32 %v2348, %v2396
    %2398 = vdwg.mxu0
    %2399 = vmatpush.bf16.msra.mxu0 %v2178
    %2400 = vmatpush.bf16.msra.mxu0 %v2177
    %2401 = vmatpush.bf16.msra.mxu0 %v2176
    %2402 = vmatpush.bf16.msra.mxu0 %v2175
    %2403 = vmatpush.bf16.msra.mxu0 %v2174
    %2404 = vmatpush.bf16.msra.mxu0 %v2173
    %2405 = vmatpush.bf16.msra.mxu0 %v2172
    %2406 = vmatpush.bf16.msra.mxu0 %v2171
    %2407 = vmatmul.bf16.gmra.mxu0 %v1414
    %v2408 = vpop.f32.mrf.mxu0
    %v2409 = vadd.f32 %v2360, %v2408
    %v2410 = vpop.f32.mrf.mxu0
    %v2411 = vadd.f32 %v2362, %v2410
    %2412 = vmatmul.bf16.gmra.mxu0 %v1422
    %v2413 = vpop.f32.mrf.mxu0
    %v2414 = vadd.f32 %v2365, %v2413
    %v2415 = vpop.f32.mrf.mxu0
    %v2416 = vadd.f32 %v2367, %v2415
    %2417 = vmatmul.bf16.gmra.mxu0 %v1430
    %v2418 = vpop.f32.mrf.mxu0
    %v2419 = vadd.f32 %v2370, %v2418
    %v2420 = vpop.f32.mrf.mxu0
    %v2421 = vadd.f32 %v2372, %v2420
    %2422 = vmatmul.bf16.gmra.mxu0 %v1438
    %v2423 = vpop.f32.mrf.mxu0
    %v2424 = vadd.f32 %v2375, %v2423
    %v2425 = vpop.f32.mrf.mxu0
    %v2426 = vadd.f32 %v2377, %v2425
    %2427 = vmatmul.bf16.gmra.mxu0 %v1446
    %v2428 = vpop.f32.mrf.mxu0
    %v2429 = vadd.f32 %v2380, %v2428
    %v2430 = vpop.f32.mrf.mxu0
    %v2431 = vadd.f32 %v2382, %v2430
    %2432 = vmatmul.bf16.gmra.mxu0 %v1454
    %v2433 = vpop.f32.mrf.mxu0
    %v2434 = vadd.f32 %v2385, %v2433
    %v2435 = vpop.f32.mrf.mxu0
    %v2436 = vadd.f32 %v2387, %v2435
    %2437 = vmatmul.bf16.gmra.mxu0 %v1462
    %v2438 = vpop.f32.mrf.mxu0
    %v2439 = vadd.f32 %v2390, %v2438
    %v2440 = vpop.f32.mrf.mxu0
    %v2441 = vadd.f32 %v2392, %v2440
    %2442 = vmatmul.bf16.gmra.mxu0 %v1470
    %v2443 = vpop.f32.mrf.mxu0
    %v2444 = vadd.f32 %v2395, %v2443
    %v2445 = vpop.f32.mrf.mxu0
    %v2446 = vadd.f32 %v2397, %v2445
    %2447 = vdwg.mxu0
    %2448 = vmatpush.bf16.msra.mxu0 %v2186
    %2449 = vmatpush.bf16.msra.mxu0 %v2185
    %2450 = vmatpush.bf16.msra.mxu0 %v2184
    %2451 = vmatpush.bf16.msra.mxu0 %v2183
    %2452 = vmatpush.bf16.msra.mxu0 %v2182
    %2453 = vmatpush.bf16.msra.mxu0 %v2181
    %2454 = vmatpush.bf16.msra.mxu0 %v2180
    %2455 = vmatpush.bf16.msra.mxu0 %v2179
    %2456 = vmatmul.bf16.gmra.mxu0 %v1415
    %v2457 = vpop.f32.mrf.mxu0
    %v2458 = vadd.f32 %v2409, %v2457
    %v2459 = vpop.f32.mrf.mxu0
    %v2460 = vadd.f32 %v2411, %v2459
    %2461 = vmatmul.bf16.gmra.mxu0 %v1423
    %v2462 = vpop.f32.mrf.mxu0
    %v2463 = vadd.f32 %v2414, %v2462
    %v2464 = vpop.f32.mrf.mxu0
    %v2465 = vadd.f32 %v2416, %v2464
    %2466 = vmatmul.bf16.gmra.mxu0 %v1431
    %v2467 = vpop.f32.mrf.mxu0
    %v2468 = vadd.f32 %v2419, %v2467
    %v2469 = vpop.f32.mrf.mxu0
    %v2470 = vadd.f32 %v2421, %v2469
    %2471 = vmatmul.bf16.gmra.mxu0 %v1439
    %v2472 = vpop.f32.mrf.mxu0
    %v2473 = vadd.f32 %v2424, %v2472
    %v2474 = vpop.f32.mrf.mxu0
    %v2475 = vadd.f32 %v2426, %v2474
    %2476 = vmatmul.bf16.gmra.mxu0 %v1447
    %v2477 = vpop.f32.mrf.mxu0
    %v2478 = vadd.f32 %v2429, %v2477
    %v2479 = vpop.f32.mrf.mxu0
    %v2480 = vadd.f32 %v2431, %v2479
    %2481 = vmatmul.bf16.gmra.mxu0 %v1455
    %v2482 = vpop.f32.mrf.mxu0
    %v2483 = vadd.f32 %v2434, %v2482
    %v2484 = vpop.f32.mrf.mxu0
    %v2485 = vadd.f32 %v2436, %v2484
    %2486 = vmatmul.bf16.gmra.mxu0 %v1463
    %v2487 = vpop.f32.mrf.mxu0
    %v2488 = vadd.f32 %v2439, %v2487
    %v2489 = vpop.f32.mrf.mxu0
    %v2490 = vadd.f32 %v2441, %v2489
    %2491 = vmatmul.bf16.gmra.mxu0 %v1471
    %v2492 = vpop.f32.mrf.mxu0
    %v2493 = vadd.f32 %v2444, %v2492
    %v2494 = vpop.f32.mrf.mxu0
    %v2495 = vadd.f32 %v2446, %v2494
    %2496 = vdwg.mxu0
    %2497 = vmatpush.bf16.msra.mxu0 %v2194
    %2498 = vmatpush.bf16.msra.mxu0 %v2193
    %2499 = vmatpush.bf16.msra.mxu0 %v2192
    %2500 = vmatpush.bf16.msra.mxu0 %v2191
    %2501 = vmatpush.bf16.msra.mxu0 %v2190
    %2502 = vmatpush.bf16.msra.mxu0 %v2189
    %2503 = vmatpush.bf16.msra.mxu0 %v2188
    %2504 = vmatpush.bf16.msra.mxu0 %v2187
    %2505 = vmatmul.bf16.gmra.mxu0 %v1416
    %v2506 = vpop.f32.mrf.mxu0
    %v2507 = vadd.f32 %v2458, %v2506
    %v2508 = vpop.f32.mrf.mxu0
    %v2509 = vadd.f32 %v2460, %v2508
    %2510 = vmatmul.bf16.gmra.mxu0 %v1424
    %v2511 = vpop.f32.mrf.mxu0
    %v2512 = vadd.f32 %v2463, %v2511
    %v2513 = vpop.f32.mrf.mxu0
    %v2514 = vadd.f32 %v2465, %v2513
    %2515 = vmatmul.bf16.gmra.mxu0 %v1432
    %v2516 = vpop.f32.mrf.mxu0
    %v2517 = vadd.f32 %v2468, %v2516
    %v2518 = vpop.f32.mrf.mxu0
    %v2519 = vadd.f32 %v2470, %v2518
    %2520 = vmatmul.bf16.gmra.mxu0 %v1440
    %v2521 = vpop.f32.mrf.mxu0
    %v2522 = vadd.f32 %v2473, %v2521
    %v2523 = vpop.f32.mrf.mxu0
    %v2524 = vadd.f32 %v2475, %v2523
    %2525 = vmatmul.bf16.gmra.mxu0 %v1448
    %v2526 = vpop.f32.mrf.mxu0
    %v2527 = vadd.f32 %v2478, %v2526
    %v2528 = vpop.f32.mrf.mxu0
    %v2529 = vadd.f32 %v2480, %v2528
    %2530 = vmatmul.bf16.gmra.mxu0 %v1456
    %v2531 = vpop.f32.mrf.mxu0
    %v2532 = vadd.f32 %v2483, %v2531
    %v2533 = vpop.f32.mrf.mxu0
    %v2534 = vadd.f32 %v2485, %v2533
    %2535 = vmatmul.bf16.gmra.mxu0 %v1464
    %v2536 = vpop.f32.mrf.mxu0
    %v2537 = vadd.f32 %v2488, %v2536
    %v2538 = vpop.f32.mrf.mxu0
    %v2539 = vadd.f32 %v2490, %v2538
    %2540 = vmatmul.bf16.gmra.mxu0 %v1472
    %v2541 = vpop.f32.mrf.mxu0
    %v2542 = vadd.f32 %v2493, %v2541
    %v2543 = vpop.f32.mrf.mxu0
    %v2544 = vadd.f32 %v2495, %v2543
    %2545 = vdwg.mxu0
    %2546 = vmatpush.bf16.msra.mxu0 %v2202
    %2547 = vmatpush.bf16.msra.mxu0 %v2201
    %2548 = vmatpush.bf16.msra.mxu0 %v2200
    %2549 = vmatpush.bf16.msra.mxu0 %v2199
    %2550 = vmatpush.bf16.msra.mxu0 %v2198
    %2551 = vmatpush.bf16.msra.mxu0 %v2197
    %2552 = vmatpush.bf16.msra.mxu0 %v2196
    %2553 = vmatpush.bf16.msra.mxu0 %v2195
    %2554 = vmatmul.bf16.gmra.mxu0 %v1417
    %v2555 = vpop.f32.mrf.mxu0
    %v2556 = vadd.f32 %v2507, %v2555
    %v2557 = vpop.f32.mrf.mxu0
    %v2558 = vadd.f32 %v2509, %v2557
    %2559 = vmatmul.bf16.gmra.mxu0 %v1425
    %v2560 = vpop.f32.mrf.mxu0
    %v2561 = vadd.f32 %v2512, %v2560
    %v2562 = vpop.f32.mrf.mxu0
    %v2563 = vadd.f32 %v2514, %v2562
    %2564 = vmatmul.bf16.gmra.mxu0 %v1433
    %v2565 = vpop.f32.mrf.mxu0
    %v2566 = vadd.f32 %v2517, %v2565
    %v2567 = vpop.f32.mrf.mxu0
    %v2568 = vadd.f32 %v2519, %v2567
    %2569 = vmatmul.bf16.gmra.mxu0 %v1441
    %v2570 = vpop.f32.mrf.mxu0
    %v2571 = vadd.f32 %v2522, %v2570
    %v2572 = vpop.f32.mrf.mxu0
    %v2573 = vadd.f32 %v2524, %v2572
    %2574 = vmatmul.bf16.gmra.mxu0 %v1449
    %v2575 = vpop.f32.mrf.mxu0
    %v2576 = vadd.f32 %v2527, %v2575
    %v2577 = vpop.f32.mrf.mxu0
    %v2578 = vadd.f32 %v2529, %v2577
    %2579 = vmatmul.bf16.gmra.mxu0 %v1457
    %v2580 = vpop.f32.mrf.mxu0
    %v2581 = vadd.f32 %v2532, %v2580
    %v2582 = vpop.f32.mrf.mxu0
    %v2583 = vadd.f32 %v2534, %v2582
    %2584 = vmatmul.bf16.gmra.mxu0 %v1465
    %v2585 = vpop.f32.mrf.mxu0
    %v2586 = vadd.f32 %v2537, %v2585
    %v2587 = vpop.f32.mrf.mxu0
    %v2588 = vadd.f32 %v2539, %v2587
    %2589 = vmatmul.bf16.gmra.mxu0 %v1473
    %v2590 = vpop.f32.mrf.mxu0
    %v2591 = vadd.f32 %v2542, %v2590
    %v2592 = vpop.f32.mrf.mxu0
    %v2593 = vadd.f32 %v2544, %v2592
    %2594 = vdwg.mxu0
    %v2595 = vadd.f32 %v2123, %v2556
    %v2596 = vadd.f32 %v2124, %v2558
    %v2597 = vadd.f32 %v2125, %v2561
    %v2598 = vadd.f32 %v2126, %v2563
    %v2599 = vadd.f32 %v2127, %v2566
    %v2600 = vadd.f32 %v2128, %v2568
    %v2601 = vadd.f32 %v2129, %v2571
    %v2602 = vadd.f32 %v2130, %v2573
    %v2603 = vadd.f32 %v2131, %v2576
    %v2604 = vadd.f32 %v2132, %v2578
    %v2605 = vadd.f32 %v2133, %v2581
    %v2606 = vadd.f32 %v2134, %v2583
    %v2607 = vadd.f32 %v2135, %v2586
    %v2608 = vadd.f32 %v2136, %v2588
    %v2609 = vadd.f32 %v2137, %v2591
    %v2610 = vadd.f32 %v2138, %v2593
    %2611 = vst [vmem:[#allocation2] sm:$0xff] %v2595
    %2612 = vst [vmem:[#allocation2 + $0x8] sm:$0xff] %v2596
    %2613 = vst [vmem:[#allocation2 + $0x10] sm:$0xff] %v2597
    %2614 = vst [vmem:[#allocation2 + $0x18] sm:$0xff] %v2598
    %2615 = vst [vmem:[#allocation2 + $0x20] sm:$0xff] %v2599
    %2616 = vst [vmem:[#allocation2 + $0x28] sm:$0xff] %v2600
    %2617 = vst [vmem:[#allocation2 + $0x30] sm:$0xff] %v2601
    %2618 = vst [vmem:[#allocation2 + $0x38] sm:$0xff] %v2602
    %2619 = vst [vmem:[#allocation2 + $0x40] sm:$0xff] %v2603
    %2620 = vst [vmem:[#allocation2 + $0x48] sm:$0xff] %v2604
    %2621 = vst [vmem:[#allocation2 + $0x50] sm:$0xff] %v2605
    %2622 = vst [vmem:[#allocation2 + $0x58] sm:$0xff] %v2606
    %2623 = vst [vmem:[#allocation2 + $0x60] sm:$0xff] %v2607
    %2624 = vst [vmem:[#allocation2 + $0x68] sm:$0xff] %v2608
    %2625 = vst [vmem:[#allocation2 + $0x70] sm:$0xff] %v2609
    %2626 = vst [vmem:[#allocation2 + $0x78] sm:$0xff] %v2610
    // Predicated region
    $region22: #{tpu_custom_call.1} parent=1 // pred_check
      _
    $region23: #{tpu_custom_call.1} parent=1 // pred_check_branch
      %2628 = sbr.rel (0) target = $region25
    $region24: #{tpu_custom_call.1} parent=1 // pred_region
      %2630 = vsyncadd [#allocation3], 0
      %s2631 = sshll.u32 [#allocation2], 4
      %s2632 = int_to_ptr.vmem [resolvable:$true] %s2631
      %s2633 = sshll.u32 %s4, 4
      %s2634 = int_to_ptr.hbm [resolvable:$true] %s2633
      %2639 = dma.vmem_to_hbm [thread:$0]  %s2632, 2048, %s2634, [#allocation3], 128, 128, 8
    $region25: #{tpu_custom_call.1} parent=1 // pred_fallthru
      _
    // Predicated region
    $region26: #{tpu_custom_call.1} parent=1 // pred_check
      _
    $region27: #{tpu_custom_call.1} parent=1 // pred_check_branch
      %2641 = sbr.rel (0) target = $region29
    $region28: #{tpu_custom_call.1} parent=1 // pred_region
      %2643 = dma.done [#allocation3], 2048
    $region29: #{tpu_custom_call.1} parent=1 // pred_fallthru
      _
    %2644 = vsyncpa [#allocation3], 1

</llo_original>
